<compile_context>
chip_gen: v6e
topology: v6e:2x2x1
jax: 0.10.0
libtpu: 0.0.40
codegen_flags: <defaults>
</compile_context>

<pallas_src>
import functools

import jax
import jax.numpy as jnp
import numpy as np
from jax.experimental import pallas as pl
from jax.experimental.pallas import tpu as pltpu


def _floordiv_const(x, d):
    if d & (d - 1) == 0:                       # power of two -> shift (always lowers)
        return x >> (d.bit_length() - 1)
    return x // d


def _mod_const(x, d):
    if d & (d - 1) == 0:
        return x & (d - 1)
    return x % d


# ---------------------------------------------------------------------------
# Fused kernel: one grid step per batch element, everything in (channels, HW)
# lane-dense layout.
# ---------------------------------------------------------------------------
def _fused_attention_kernel(x_ref, wqkv_ref, wdw_ref, bdw_ref, temp_ref,
                            wproj_ref, bproj_ref, o_ref, *, H, W, ch):
    C, HW = o_ref.shape

    # ---- qkv 1x1 conv: bias folded into the weight's extra column (x carries
    #      a ones row).  bf16 operands, f32 accumulation on the MXU.
    qkv = jax.lax.dot_general(
        wqkv_ref[...], x_ref[...],                             # (3C, C+1) @ (C+1, HW)
        dimension_numbers=(((1,), (0,)), ((), ())),
        preferred_element_type=jnp.float32)                    # (3C, HW) f32

    # ---- depthwise 3x3 conv (padding=1, groups=3C) on the flattened HW axis.
    #      Taps are lane rotations (XLU slot); edge-validity masks are built
    #      in-kernel from iota compares (VPU) instead of DMA'd constants.
    idx = jax.lax.broadcasted_iota(jnp.int32, (1, HW), 1)
    row = _floordiv_const(idx, W)
    col = _mod_const(idx, W)
    row_ok = {-1: row >= 1, 0: None, 1: row < (H - 1)}
    col_ok = {-1: col >= 1, 0: None, 1: col < (W - 1)}

    wdw = wdw_ref[...]                                         # (3C, 9) f32
    # Center tap (always valid): no roll, no mask; dwconv bias fused here,
    # which also replaces the separate zeros-init of the accumulator.
    acc = qkv * wdw[:, 4:5] + bdw_ref[...]
    for dy in range(3):
        for dx in range(3):
            if dy == 1 and dx == 1:
                continue
            oy, ox = dy - 1, dx - 1
            t = dy * 3 + dx
            s = oy * W + ox                                    # flat source offset
            shifted = pltpu.roll(qkv, (-s) % HW, axis=1)
            r_ok, c_ok = row_ok[oy], col_ok[ox]
            valid = c_ok if r_ok is None else (r_ok if c_ok is None else r_ok & c_ok)
            acc = acc + jnp.where(valid, shifted, 0.0) * wdw[:, t:t + 1]
    qkv = acc                                                  # (3C, HW) f32

    q = qkv[0:C, :]
    k = qkv[C:2 * C, :]
    v = qkv[2 * C:3 * C, :]

    # ---- L2 normalize over HW (torch eps=1e-12 -> clamp sum-of-squares).
    #      Temperature (per-head, row-wise) is folded into qn so the score
    #      matmul already carries it.
    temp = temp_ref[...]                                       # (C, 1) f32
    q_scale = temp * jax.lax.rsqrt(
        jnp.maximum(jnp.sum(q * q, axis=-1, keepdims=True), 1e-24))
    qn = (q * q_scale).astype(jnp.bfloat16)
    kn = (k * jax.lax.rsqrt(
        jnp.maximum(jnp.sum(k * k, axis=-1, keepdims=True), 1e-24))
          ).astype(jnp.bfloat16)

    # ---- multi-head "channel" attention as ONE masked (C, C) matmul.
    #      Contract HW on both operands (MXU transposed-RHS form; no
    #      materialized kn transpose).  bf16 in, f32 accumulate.
    a = jax.lax.dot_general(
        qn, kn, dimension_numbers=(((1,), (1,)), ((), ())),
        preferred_element_type=jnp.float32)                    # (C, C) f32

    # Per-head softmax: q,k are unit vectors so |logit| <= |temperature|;
    # subtracting |temp| (broadcast, VPU) replaces the XLU row-max reduce.
    # Cross-head entries are zeroed with a select (no -1e30 bias needed).
    hi = _floordiv_const(jax.lax.broadcasted_iota(jnp.int32, (C, C), 0), ch)
    hj = _floordiv_const(jax.lax.broadcasted_iota(jnp.int32, (C, C), 1), ch)
    e = jnp.where(hi == hj, jnp.exp(a - jnp.abs(temp)), 0.0)
    p = e * pl.reciprocal(jnp.sum(e, axis=-1, keepdims=True), approx=True)

    out = jax.lax.dot_general(
        p.astype(jnp.bfloat16), v.astype(jnp.bfloat16),
        dimension_numbers=(((1,), (0,)), ((), ())),
        preferred_element_type=jnp.float32)                    # (C, HW) f32

    # ---- project_out 1x1 conv (bf16 operands, f32 acc) + bias.
    out = jax.lax.dot_general(
        wproj_ref[...], out.astype(jnp.bfloat16),
        dimension_numbers=(((1,), (0,)), ((), ())),
        preferred_element_type=jnp.float32) + bproj_ref[...]

    o_ref[...] = out.astype(o_ref.dtype)


def attention_forward(x, params, num_heads):
    """x: (B, C, H, W) NCHW, same interface as the PyTorch module."""
    B, C, H, W = x.shape
    HW = H * W
    ch = C // num_heads
    C3 = 3 * C

    # Lane-dense (channels, HW) layout; ones row appended so the qkv bias
    # folds into the matmul.  Inputs/weights of the matmuls are pre-cast to
    # bf16 (f32 accumulation happens on the MXU inside the kernel).
    x_flat = x.reshape(B, C, HW)
    x_aug = jnp.concatenate(
        [x_flat, jnp.ones((B, 1, HW), x.dtype)], axis=1).astype(jnp.bfloat16)

    w_qkv_aug = jnp.concatenate(
        [params["w_qkv"], params["b_qkv"].reshape(C3, 1)], axis=1
    ).astype(jnp.bfloat16)                                      # (3C, C+1)
    w_proj = params["w_proj"].astype(jnp.bfloat16)              # (C, C)
    w_dw = params["w_dw"].reshape(C3, 9).astype(jnp.float32)    # 3x3 taps flattened
    b_dw = params["b_dw"].reshape(C3, 1).astype(jnp.float32)
    b_proj = params["b_proj"].reshape(C, 1).astype(jnp.float32)
    temp_rows = jnp.repeat(
        params["temperature"].reshape(-1), ch).reshape(C, 1).astype(jnp.float32)

    kernel = functools.partial(_fused_attention_kernel, H=H, W=W, ch=ch)

    def full(shape):
        return pl.BlockSpec(shape, lambda b: (0,) * len(shape))

    flops = 2 * B * HW * (3 * C * (C + 1) + 3 * C * C)          # qkv + scores + p·v + proj
    cost = pl.CostEstimate(
        flops=flops,
        transcendentals=B * (C * C + 3 * C),
        bytes_accessed=(x_aug.size * 2 + B * C * HW * 4
                        + w_qkv_aug.size * 2 + w_proj.size * 2
                        + (w_dw.size + b_dw.size + b_proj.size + temp_rows.size) * 4))

    out = pl.pallas_call(
        kernel,
        out_shape=jax.ShapeDtypeStruct((B, C, HW), x.dtype),
        grid=(B,),
        in_specs=[
            pl.BlockSpec((None, C + 1, HW), lambda b: (b, 0, 0)),  # x (+ ones row)
            full((C3, C + 1)),                                     # w_qkv | b_qkv
            full((C3, 9)),                                         # depthwise 3x3 weights
            full((C3, 1)),                                         # depthwise bias
            full((C, 1)),                                          # per-row temperature
            full((C, C)),                                          # w_proj
            full((C, 1)),                                          # b_proj
        ],
        out_specs=pl.BlockSpec((None, C, HW), lambda b: (b, 0, 0)),
        compiler_params=pltpu.CompilerParams(dimension_semantics=("parallel",)),
        cost_estimate=cost,
    )(x_aug, w_qkv_aug, w_dw, b_dw, temp_rows, w_proj, b_proj)

    return out.reshape(B, C, H, W)


# ---------------------------------------------------------------------------
# Pure-JAX f32 reference (mirrors the PyTorch module exactly) for verification.
# ---------------------------------------------------------------------------
def reference(x, params, num_heads):
    B, C, H, W = x.shape
    qkv = jnp.einsum("oc,bchw->bohw", params["w_qkv"], x) + params["b_qkv"][None, :, None, None]
    xp = jnp.pad(qkv, ((0, 0), (0, 0), (1, 1), (1, 1)))
    acc = jnp.zeros_like(qkv)
    for dy in range(3):
        for dx in range(3):
            acc = acc + xp[:, :, dy:dy + H, dx:dx + W] * params["w_dw"][None, :, dy, dx, None, None]
    qkv = acc + params["b_dw"][None, :, None, None]
    q, k, v = jnp.split(qkv, 3, axis=1)
    ch = C // num_heads
    q = q.reshape(B, num_heads, ch, H * W)
    k = k.reshape(B, num_heads, ch, H * W)
    v = v.reshape(B, num_heads, ch, H * W)
    qn = q / jnp.maximum(jnp.linalg.norm(q, axis=-1, keepdims=True), 1e-12)
    kn = k / jnp.maximum(jnp.linalg.norm(k, axis=-1, keepdims=True), 1e-12)
    attn = jnp.einsum("bhce,bhde->bhcd", qn, kn) * params["temperature"][None, :, None, None]
    attn = jax.nn.softmax(attn, axis=-1)
    out = jnp.einsum("bhcd,bhde->bhce", attn, v).reshape(B, C, H, W)
    out = jnp.einsum("oc,bchw->bohw", params["w_proj"], out) + params["b_proj"][None, :, None, None]
    return out


if __name__ == "__main__":
    B, C, H, W = 2, 16, 16, 16
    num_heads = 4

    key = jax.random.PRNGKey(0)
    ks = jax.random.split(key, 7)
    x = jax.random.normal(ks[0], (B, C, H, W), jnp.float32)

    # Deterministic synthetic parameters (PyTorch Conv2d weight layouts, squeezed).
    params = {
        "w_qkv": 0.1 * jax.random.normal(ks[1], (3 * C, C), jnp.float32),    # Conv2d(C,3C,1)
        "b_qkv": 0.1 * jax.random.normal(ks[2], (3 * C,), jnp.float32),
        "w_dw": 0.1 * jax.random.normal(ks[3], (3 * C, 3, 3), jnp.float32),  # depthwise 3x3
        "b_dw": 0.1 * jax.random.normal(ks[4], (3 * C,), jnp.float32),
        "w_proj": 0.1 * jax.random.normal(ks[5], (C, C), jnp.float32),       # Conv2d(C,C,1)
        "b_proj": 0.1 * jax.random.normal(ks[6], (C,), jnp.float32),
        "temperature": jnp.ones((num_heads,), jnp.float32),                  # Parameter(ones(h,1,1))
    }

    out = attention_forward(x, params, num_heads)
    out = jax.block_until_ready(out)

    # Tolerance loosened vs the f32 reference because the MXU matmuls now use
    # bf16 operands (f32 accumulation), per the performance review.
    ref = reference(x, params, num_heads)
    np.testing.assert_allclose(np.asarray(out), np.asarray(ref), rtol=5e-2, atol=5e-3)

    print("KERNEL_OK")
</pallas_src>

<mosaic_0001>
module attributes {stable_mosaic.version = 11 : i64} {
  func.func @_fused_attention_kernel(%arg0: i32, %arg1: memref<1x17x256xbf16, #tpu.memory_space<vmem>>, %arg2: memref<48x17xbf16, #tpu.memory_space<vmem>>, %arg3: memref<48x9xf32, #tpu.memory_space<vmem>>, %arg4: memref<48x1xf32, #tpu.memory_space<vmem>>, %arg5: memref<16x1xf32, #tpu.memory_space<vmem>>, %arg6: memref<16x16xbf16, #tpu.memory_space<vmem>>, %arg7: memref<16x1xf32, #tpu.memory_space<vmem>>, %arg8: memref<1x16x256xf32, #tpu.memory_space<vmem>>) attributes {dimension_semantics = [#tpu.dimension_semantics<parallel>], iteration_bounds = array<i64: 2>, scalar_prefetch = 0 : i64, scratch_operands = 0 : i64, tpu.core_type = #tpu.core_type<tc>, window_params = [{transform_indices = @transform_0, window_bounds = array<i64: 1, 17, 256>}, {pipeline_mode = #tpu.pipeline_mode<synchronous>, transform_indices = @transform_1, window_bounds = array<i64: 48, 17>}, {pipeline_mode = #tpu.pipeline_mode<synchronous>, transform_indices = @transform_2, window_bounds = array<i64: 48, 9>}, {pipeline_mode = #tpu.pipeline_mode<synchronous>, transform_indices = @transform_3, window_bounds = array<i64: 48, 1>}, {pipeline_mode = #tpu.pipeline_mode<synchronous>, transform_indices = @transform_4, window_bounds = array<i64: 16, 1>}, {pipeline_mode = #tpu.pipeline_mode<synchronous>, transform_indices = @transform_5, window_bounds = array<i64: 16, 16>}, {pipeline_mode = #tpu.pipeline_mode<synchronous>, transform_indices = @transform_6, window_bounds = array<i64: 16, 1>}, {transform_indices = @transform_7, window_bounds = array<i64: 1, 16, 256>}]} {
    %c0 = arith.constant 0 : index
    %c0_0 = arith.constant 0 : index
    %0 = vector.load %arg2[%c0, %c0_0] : memref<48x17xbf16, #tpu.memory_space<vmem>>, vector<48x17xbf16>
    %c0_1 = arith.constant 0 : index
    %c0_2 = arith.constant 0 : index
    %c0_3 = arith.constant 0 : index
    %1 = vector.load %arg1[%c0_1, %c0_2, %c0_3] : memref<1x17x256xbf16, #tpu.memory_space<vmem>>, vector<1x17x256xbf16>
    %2 = vector.shape_cast %1 : vector<1x17x256xbf16> to vector<17x256xbf16>
    %cst = arith.constant dense<0.000000e+00> : vector<48x256xf32>
    %3 = tpu.matmul %0, %2, %cst {dimension_numbers = #tpu.dot_dimension_numbers<[1], [0], [0], [1], [0, 0, 1, 1], [], []>} : vector<48x17xbf16>, vector<17x256xbf16>, vector<48x256xf32> -> vector<48x256xf32>
    %4 = tpu.iota {dimensions = array<i32: 1>} : vector<1x256xi32>
    %c4_i32 = arith.constant 4 : i32
    %5 = vector.broadcast %c4_i32 : i32 to vector<1x256xi32>
    %6 = arith.shrsi %4, %5 : vector<1x256xi32>
    %c15_i32 = arith.constant 15 : i32
    %7 = vector.broadcast %c15_i32 : i32 to vector<1x256xi32>
    %8 = arith.andi %4, %7 : vector<1x256xi32>
    %c1_i32 = arith.constant 1 : i32
    %9 = vector.broadcast %c1_i32 : i32 to vector<1x256xi32>
    %10 = arith.cmpi sge, %6, %9 : vector<1x256xi32>
    %c15_i32_4 = arith.constant 15 : i32
    %11 = vector.broadcast %c15_i32_4 : i32 to vector<1x256xi32>
    %12 = arith.cmpi slt, %6, %11 : vector<1x256xi32>
    %c1_i32_5 = arith.constant 1 : i32
    %13 = vector.broadcast %c1_i32_5 : i32 to vector<1x256xi32>
    %14 = arith.cmpi sge, %8, %13 : vector<1x256xi32>
    %c15_i32_6 = arith.constant 15 : i32
    %15 = vector.broadcast %c15_i32_6 : i32 to vector<1x256xi32>
    %16 = arith.cmpi slt, %8, %15 : vector<1x256xi32>
    %c0_7 = arith.constant 0 : index
    %c0_8 = arith.constant 0 : index
    %17 = vector.load %arg3[%c0_7, %c0_8] : memref<48x9xf32, #tpu.memory_space<vmem>>, vector<48x9xf32>
    %18 = vector.extract_strided_slice %17 {offsets = [0, 4], sizes = [48, 1], strides = [1, 1]} : vector<48x9xf32> to vector<48x1xf32>
    %19 = vector.broadcast %18 : vector<48x1xf32> to vector<48x256xf32>
    %20 = arith.mulf %3, %19 : vector<48x256xf32>
    %c0_9 = arith.constant 0 : index
    %c0_10 = arith.constant 0 : index
    %21 = vector.load %arg4[%c0_9, %c0_10] : memref<48x1xf32, #tpu.memory_space<vmem>>, vector<48x1xf32>
    %22 = vector.broadcast %21 : vector<48x1xf32> to vector<48x256xf32>
    %23 = arith.addf %20, %22 : vector<48x256xf32>
    %c17_i32 = arith.constant 17 : i32
    %24 = tpu.dynamic_rotate %3 by %c17_i32 dim 1 : vector<48x256xf32>, i32 -> vector<48x256xf32>
    %25 = arith.andi %10, %14 : vector<1x256xi1>
    %cst_11 = arith.constant 0.000000e+00 : f32
    %26 = vector.shape_cast %25 : vector<1x256xi1> to vector<1x256xi1>
    %27 = vector.broadcast %26 : vector<1x256xi1> to vector<48x256xi1>
    %28 = vector.broadcast %cst_11 : f32 to vector<48x256xf32>
    %29 = arith.select %27, %24, %28 : vector<48x256xi1>, vector<48x256xf32>
    %30 = vector.extract_strided_slice %17 {offsets = [0, 0], sizes = [48, 1], strides = [1, 1]} : vector<48x9xf32> to vector<48x1xf32>
    %31 = vector.broadcast %30 : vector<48x1xf32> to vector<48x256xf32>
    %32 = arith.mulf %29, %31 : vector<48x256xf32>
    %33 = arith.addf %23, %32 : vector<48x256xf32>
    %c16_i32 = arith.constant 16 : i32
    %34 = tpu.dynamic_rotate %3 by %c16_i32 dim 1 : vector<48x256xf32>, i32 -> vector<48x256xf32>
    %cst_12 = arith.constant 0.000000e+00 : f32
    %35 = vector.shape_cast %10 : vector<1x256xi1> to vector<1x256xi1>
    %36 = vector.broadcast %35 : vector<1x256xi1> to vector<48x256xi1>
    %37 = vector.broadcast %cst_12 : f32 to vector<48x256xf32>
    %38 = arith.select %36, %34, %37 : vector<48x256xi1>, vector<48x256xf32>
    %39 = vector.extract_strided_slice %17 {offsets = [0, 1], sizes = [48, 1], strides = [1, 1]} : vector<48x9xf32> to vector<48x1xf32>
    %40 = vector.broadcast %39 : vector<48x1xf32> to vector<48x256xf32>
    %41 = arith.mulf %38, %40 : vector<48x256xf32>
    %42 = arith.addf %33, %41 : vector<48x256xf32>
    %c15_i32_13 = arith.constant 15 : i32
    %43 = tpu.dynamic_rotate %3 by %c15_i32_13 dim 1 : vector<48x256xf32>, i32 -> vector<48x256xf32>
    %44 = arith.andi %10, %16 : vector<1x256xi1>
    %cst_14 = arith.constant 0.000000e+00 : f32
    %45 = vector.shape_cast %44 : vector<1x256xi1> to vector<1x256xi1>
    %46 = vector.broadcast %45 : vector<1x256xi1> to vector<48x256xi1>
    %47 = vector.broadcast %cst_14 : f32 to vector<48x256xf32>
    %48 = arith.select %46, %43, %47 : vector<48x256xi1>, vector<48x256xf32>
    %49 = vector.extract_strided_slice %17 {offsets = [0, 2], sizes = [48, 1], strides = [1, 1]} : vector<48x9xf32> to vector<48x1xf32>
    %50 = vector.broadcast %49 : vector<48x1xf32> to vector<48x256xf32>
    %51 = arith.mulf %48, %50 : vector<48x256xf32>
    %52 = arith.addf %42, %51 : vector<48x256xf32>
    %c1_i32_15 = arith.constant 1 : i32
    %53 = tpu.dynamic_rotate %3 by %c1_i32_15 dim 1 : vector<48x256xf32>, i32 -> vector<48x256xf32>
    %cst_16 = arith.constant 0.000000e+00 : f32
    %54 = vector.shape_cast %14 : vector<1x256xi1> to vector<1x256xi1>
    %55 = vector.broadcast %54 : vector<1x256xi1> to vector<48x256xi1>
    %56 = vector.broadcast %cst_16 : f32 to vector<48x256xf32>
    %57 = arith.select %55, %53, %56 : vector<48x256xi1>, vector<48x256xf32>
    %58 = vector.extract_strided_slice %17 {offsets = [0, 3], sizes = [48, 1], strides = [1, 1]} : vector<48x9xf32> to vector<48x1xf32>
    %59 = vector.broadcast %58 : vector<48x1xf32> to vector<48x256xf32>
    %60 = arith.mulf %57, %59 : vector<48x256xf32>
    %61 = arith.addf %52, %60 : vector<48x256xf32>
    %c255_i32 = arith.constant 255 : i32
    %62 = tpu.dynamic_rotate %3 by %c255_i32 dim 1 : vector<48x256xf32>, i32 -> vector<48x256xf32>
    %cst_17 = arith.constant 0.000000e+00 : f32
    %63 = vector.shape_cast %16 : vector<1x256xi1> to vector<1x256xi1>
    %64 = vector.broadcast %63 : vector<1x256xi1> to vector<48x256xi1>
    %65 = vector.broadcast %cst_17 : f32 to vector<48x256xf32>
    %66 = arith.select %64, %62, %65 : vector<48x256xi1>, vector<48x256xf32>
    %67 = vector.extract_strided_slice %17 {offsets = [0, 5], sizes = [48, 1], strides = [1, 1]} : vector<48x9xf32> to vector<48x1xf32>
    %68 = vector.broadcast %67 : vector<48x1xf32> to vector<48x256xf32>
    %69 = arith.mulf %66, %68 : vector<48x256xf32>
    %70 = arith.addf %61, %69 : vector<48x256xf32>
    %c241_i32 = arith.constant 241 : i32
    %71 = tpu.dynamic_rotate %3 by %c241_i32 dim 1 : vector<48x256xf32>, i32 -> vector<48x256xf32>
    %72 = arith.andi %12, %14 : vector<1x256xi1>
    %cst_18 = arith.constant 0.000000e+00 : f32
    %73 = vector.shape_cast %72 : vector<1x256xi1> to vector<1x256xi1>
    %74 = vector.broadcast %73 : vector<1x256xi1> to vector<48x256xi1>
    %75 = vector.broadcast %cst_18 : f32 to vector<48x256xf32>
    %76 = arith.select %74, %71, %75 : vector<48x256xi1>, vector<48x256xf32>
    %77 = vector.extract_strided_slice %17 {offsets = [0, 6], sizes = [48, 1], strides = [1, 1]} : vector<48x9xf32> to vector<48x1xf32>
    %78 = vector.broadcast %77 : vector<48x1xf32> to vector<48x256xf32>
    %79 = arith.mulf %76, %78 : vector<48x256xf32>
    %80 = arith.addf %70, %79 : vector<48x256xf32>
    %c240_i32 = arith.constant 240 : i32
    %81 = tpu.dynamic_rotate %3 by %c240_i32 dim 1 : vector<48x256xf32>, i32 -> vector<48x256xf32>
    %cst_19 = arith.constant 0.000000e+00 : f32
    %82 = vector.shape_cast %12 : vector<1x256xi1> to vector<1x256xi1>
    %83 = vector.broadcast %82 : vector<1x256xi1> to vector<48x256xi1>
    %84 = vector.broadcast %cst_19 : f32 to vector<48x256xf32>
    %85 = arith.select %83, %81, %84 : vector<48x256xi1>, vector<48x256xf32>
    %86 = vector.extract_strided_slice %17 {offsets = [0, 7], sizes = [48, 1], strides = [1, 1]} : vector<48x9xf32> to vector<48x1xf32>
    %87 = vector.broadcast %86 : vector<48x1xf32> to vector<48x256xf32>
    %88 = arith.mulf %85, %87 : vector<48x256xf32>
    %89 = arith.addf %80, %88 : vector<48x256xf32>
    %c239_i32 = arith.constant 239 : i32
    %90 = tpu.dynamic_rotate %3 by %c239_i32 dim 1 : vector<48x256xf32>, i32 -> vector<48x256xf32>
    %91 = arith.andi %12, %16 : vector<1x256xi1>
    %cst_20 = arith.constant 0.000000e+00 : f32
    %92 = vector.shape_cast %91 : vector<1x256xi1> to vector<1x256xi1>
    %93 = vector.broadcast %92 : vector<1x256xi1> to vector<48x256xi1>
    %94 = vector.broadcast %cst_20 : f32 to vector<48x256xf32>
    %95 = arith.select %93, %90, %94 : vector<48x256xi1>, vector<48x256xf32>
    %96 = vector.extract_strided_slice %17 {offsets = [0, 8], sizes = [48, 1], strides = [1, 1]} : vector<48x9xf32> to vector<48x1xf32>
    %97 = vector.broadcast %96 : vector<48x1xf32> to vector<48x256xf32>
    %98 = arith.mulf %95, %97 : vector<48x256xf32>
    %99 = arith.addf %89, %98 : vector<48x256xf32>
    %100 = vector.extract_strided_slice %99 {offsets = [0, 0], sizes = [16, 256], strides = [1, 1]} : vector<48x256xf32> to vector<16x256xf32>
    %101 = vector.extract_strided_slice %99 {offsets = [16, 0], sizes = [16, 256], strides = [1, 1]} : vector<48x256xf32> to vector<16x256xf32>
    %102 = vector.extract_strided_slice %99 {offsets = [32, 0], sizes = [16, 256], strides = [1, 1]} : vector<48x256xf32> to vector<16x256xf32>
    %c0_21 = arith.constant 0 : index
    %c0_22 = arith.constant 0 : index
    %103 = vector.load %arg5[%c0_21, %c0_22] : memref<16x1xf32, #tpu.memory_space<vmem>>, vector<16x1xf32>
    %104 = arith.mulf %100, %100 : vector<16x256xf32>
    %cst_23 = arith.constant dense<0.000000e+00> : vector<16xf32>
    %105 = vector.multi_reduction <add>, %104, %cst_23 [1] : vector<16x256xf32> to vector<16xf32>
    %106 = vector.shape_cast %105 : vector<16xf32> to vector<16x1xf32>
    %cst_24 = arith.constant 1.000000e-24 : f32
    %107 = vector.broadcast %cst_24 : f32 to vector<16x1xf32>
    %108 = arith.maximumf %106, %107 : vector<16x1xf32>
    %109 = math.rsqrt %108 : vector<16x1xf32>
    %110 = arith.mulf %103, %109 : vector<16x1xf32>
    %111 = vector.broadcast %110 : vector<16x1xf32> to vector<16x256xf32>
    %112 = arith.mulf %100, %111 : vector<16x256xf32>
    %113 = arith.truncf %112 : vector<16x256xf32> to vector<16x256xbf16>
    %114 = arith.mulf %101, %101 : vector<16x256xf32>
    %cst_25 = arith.constant dense<0.000000e+00> : vector<16xf32>
    %115 = vector.multi_reduction <add>, %114, %cst_25 [1] : vector<16x256xf32> to vector<16xf32>
    %116 = vector.shape_cast %115 : vector<16xf32> to vector<16x1xf32>
    %cst_26 = arith.constant 1.000000e-24 : f32
    %117 = vector.broadcast %cst_26 : f32 to vector<16x1xf32>
    %118 = arith.maximumf %116, %117 : vector<16x1xf32>
    %119 = math.rsqrt %118 : vector<16x1xf32>
    %120 = vector.broadcast %119 : vector<16x1xf32> to vector<16x256xf32>
    %121 = arith.mulf %101, %120 : vector<16x256xf32>
    %122 = arith.truncf %121 : vector<16x256xf32> to vector<16x256xbf16>
    %cst_27 = arith.constant dense<0.000000e+00> : vector<16x16xf32>
    %123 = tpu.matmul %113, %122, %cst_27 {dimension_numbers = #tpu.dot_dimension_numbers<[1], [1], [0], [0], [0, 0, 1, 0], [], []>} : vector<16x256xbf16>, vector<16x256xbf16>, vector<16x16xf32> -> vector<16x16xf32>
    %124 = tpu.iota {dimensions = array<i32: 0>} : vector<16x16xi32>
    %c2_i32 = arith.constant 2 : i32
    %125 = vector.broadcast %c2_i32 : i32 to vector<16x16xi32>
    %126 = arith.shrsi %124, %125 : vector<16x16xi32>
    %127 = tpu.iota {dimensions = array<i32: 1>} : vector<16x16xi32>
    %c2_i32_28 = arith.constant 2 : i32
    %128 = vector.broadcast %c2_i32_28 : i32 to vector<16x16xi32>
    %129 = arith.shrsi %127, %128 : vector<16x16xi32>
    %130 = arith.cmpi eq, %126, %129 : vector<16x16xi32>
    %131 = math.absf %103 : vector<16x1xf32>
    %132 = vector.broadcast %131 : vector<16x1xf32> to vector<16x16xf32>
    %133 = arith.subf %123, %132 : vector<16x16xf32>
    %134 = math.exp %133 : vector<16x16xf32>
    %cst_29 = arith.constant 0.000000e+00 : f32
    %135 = vector.broadcast %cst_29 : f32 to vector<16x16xf32>
    %136 = arith.select %130, %134, %135 : vector<16x16xi1>, vector<16x16xf32>
    %cst_30 = arith.constant dense<0.000000e+00> : vector<16xf32>
    %137 = vector.multi_reduction <add>, %136, %cst_30 [1] : vector<16x16xf32> to vector<16xf32>
    %138 = vector.shape_cast %137 : vector<16xf32> to vector<16x1xf32>
    %139 = tpu.reciprocal %138 {approx = true} : vector<16x1xf32> -> vector<16x1xf32>
    %140 = vector.broadcast %139 : vector<16x1xf32> to vector<16x16xf32>
    %141 = arith.mulf %136, %140 : vector<16x16xf32>
    %142 = arith.truncf %141 : vector<16x16xf32> to vector<16x16xbf16>
    %143 = arith.truncf %102 : vector<16x256xf32> to vector<16x256xbf16>
    %cst_31 = arith.constant dense<0.000000e+00> : vector<16x256xf32>
    %144 = tpu.matmul %142, %143, %cst_31 {dimension_numbers = #tpu.dot_dimension_numbers<[1], [0], [0], [1], [0, 0, 1, 1], [], []>} : vector<16x16xbf16>, vector<16x256xbf16>, vector<16x256xf32> -> vector<16x256xf32>
    %c0_32 = arith.constant 0 : index
    %c0_33 = arith.constant 0 : index
    %145 = vector.load %arg6[%c0_32, %c0_33] : memref<16x16xbf16, #tpu.memory_space<vmem>>, vector<16x16xbf16>
    %146 = arith.truncf %144 : vector<16x256xf32> to vector<16x256xbf16>
    %cst_34 = arith.constant dense<0.000000e+00> : vector<16x256xf32>
    %147 = tpu.matmul %145, %146, %cst_34 {dimension_numbers = #tpu.dot_dimension_numbers<[1], [0], [0], [1], [0, 0, 1, 1], [], []>} : vector<16x16xbf16>, vector<16x256xbf16>, vector<16x256xf32> -> vector<16x256xf32>
    %c0_35 = arith.constant 0 : index
    %c0_36 = arith.constant 0 : index
    %148 = vector.load %arg7[%c0_35, %c0_36] : memref<16x1xf32, #tpu.memory_space<vmem>>, vector<16x1xf32>
    %149 = vector.broadcast %148 : vector<16x1xf32> to vector<16x256xf32>
    %150 = arith.addf %147, %149 : vector<16x256xf32>
    %c0_37 = arith.constant 0 : index
    %c0_38 = arith.constant 0 : index
    %c0_39 = arith.constant 0 : index
    %151 = vector.load %arg8[%c0_37, %c0_38, %c0_39] : memref<1x16x256xf32, #tpu.memory_space<vmem>>, vector<1x16x256xf32>
    %152 = vector.shape_cast %151 : vector<1x16x256xf32> to vector<16x256xf32>
    %153 = vector.shape_cast %150 : vector<16x256xf32> to vector<1x16x256xf32>
    tpu.vector_store %arg8[%c0_37, %c0_38, %c0_39], %153 {strides = array<i32>} : memref<1x16x256xf32, #tpu.memory_space<vmem>>, vector<1x16x256xf32>,
    return
  }
  func.func @transform_0(%arg0: i32) -> (i32, i32, i32) {
    %c0_i32 = arith.constant 0 : i32
    %c0_i32_0 = arith.constant 0 : i32
    %c0_i32_1 = arith.constant 0 : i32
    return %arg0, %c0_i32, %c0_i32_0 : i32, i32, i32
  }
  func.func @transform_1(%arg0: i32) -> (i32, i32) {
    %c0_i32 = arith.constant 0 : i32
    %c0_i32_0 = arith.constant 0 : i32
    %c0_i32_1 = arith.constant 0 : i32
    return %c0_i32, %c0_i32_0 : i32, i32
  }
  func.func @transform_2(%arg0: i32) -> (i32, i32) {
    %c0_i32 = arith.constant 0 : i32
    %c0_i32_0 = arith.constant 0 : i32
    %c0_i32_1 = arith.constant 0 : i32
    return %c0_i32, %c0_i32_0 : i32, i32
  }
  func.func @transform_3(%arg0: i32) -> (i32, i32) {
    %c0_i32 = arith.constant 0 : i32
    %c0_i32_0 = arith.constant 0 : i32
    %c0_i32_1 = arith.constant 0 : i32
    return %c0_i32, %c0_i32_0 : i32, i32
  }
  func.func @transform_4(%arg0: i32) -> (i32, i32) {
    %c0_i32 = arith.constant 0 : i32
    %c0_i32_0 = arith.constant 0 : i32
    %c0_i32_1 = arith.constant 0 : i32
    return %c0_i32, %c0_i32_0 : i32, i32
  }
  func.func @transform_5(%arg0: i32) -> (i32, i32) {
    %c0_i32 = arith.constant 0 : i32
    %c0_i32_0 = arith.constant 0 : i32
    %c0_i32_1 = arith.constant 0 : i32
    return %c0_i32, %c0_i32_0 : i32, i32
  }
  func.func @transform_6(%arg0: i32) -> (i32, i32) {
    %c0_i32 = arith.constant 0 : i32
    %c0_i32_0 = arith.constant 0 : i32
    %c0_i32_1 = arith.constant 0 : i32
    return %c0_i32, %c0_i32_0 : i32, i32
  }
  func.func @transform_7(%arg0: i32) -> (i32, i32, i32) {
    %c0_i32 = arith.constant 0 : i32
    %c0_i32_0 = arith.constant 0 : i32
    %c0_i32_1 = arith.constant 0 : i32
    return %arg0, %c0_i32, %c0_i32_0 : i32, i32, i32
  }
}

</mosaic_0001>

<llo_original>
// kernel: tpu_custom_call.1
$region0: #{tpu_custom_call.1}
  #allocation0 [shape = 'u32[]', space=smem, size = 0x4, offset = 0x4, fixed_abs, tag = 'smem constant byte address 0x4 - core index']
  #allocation1 [shape = 'u32[144,128]{1,0:T(1,128)}', space=vmem, size = 0x12000, scoped, tag = 'internal scratch']
  %s0 = inlined_call_operand.vmem [shape: bf16[2,17,256], index: 0, kind: input, shape index: {}]
  %s1 = inlined_call_operand.vmem [shape: bf16[48,17], index: 1, kind: input, shape index: {}]
  %s2 = inlined_call_operand.vmem [shape: f32[48,9], index: 2, kind: input, shape index: {}]
  %s3 = inlined_call_operand.vmem [shape: f32[48,1], index: 3, kind: input, shape index: {}]
  %s4 = inlined_call_operand.vmem [shape: f32[16,1], index: 4, kind: input, shape index: {}]
  %s5 = inlined_call_operand.vmem [shape: bf16[16,16], index: 5, kind: input, shape index: {}]
  %s6 = inlined_call_operand.vmem [shape: f32[16,1], index: 6, kind: input, shape index: {}]
  %s7 = inlined_call_operand.hbm [shape: f32[2,16,256], index: 7, kind: output, shape index: {}]
  %s8 = sld [smem:[#allocation0]]
  $region61: #{tpu_custom_call.1} parent=0
    _
  %s10 = ssub.s32 1, %s8
  %s11 = scalar_select 0, %s10, %s8
  $region1: #{tpu_custom_call.1} parent=0
    #allocation2 [shape = 'u8[32768]{0}', space=vmem, size = 0x8000, scoped, tag = 'output window, operand 0']
    #allocation3 [shape = 's32[2]{0}', space=sflag, size = 0x8, scoped, tag = 'scoped memory for tpu_custom_call.1']
    %12 = vsyncpa [#allocation3], 0
    %s13 = scalar_lea.sflag [#allocation3], 1
    %14 = vsyncpa %s13, 0
    loop: start=0, step=1, limit=4
    $region2: #{tpu_custom_call.1} parent=1 // loop_pre_header
      _
    $region3: #{tpu_custom_call.1} parent=1 // loop_header
      %s16 = sphi 0, %s20
      %p17 = scmp.ge.s32.totalorder %s16, 4
      %s26 = sphi 0, %s28
      %s29 = sphi 0, %s26
      %s30 = sphi 0, %s29
      %s46 = sphi 0, %s30
      %s50 = sphi 0, %s50
      %s52 = sphi 0, %s50
      %s53 = sphi 0, %s52
      %s67 = sphi 0, %s53
      %s71 = sphi 0, %s71
      %s73 = sphi 0, %s71
      %s74 = sphi 0, %s73
      %s88 = sphi 0, %s74
      %s92 = sphi 0, %s92
      %s94 = sphi 0, %s92
      %s95 = sphi 0, %s94
      %s109 = sphi 0, %s95
      %s113 = sphi 0, %s113
      %s115 = sphi 0, %s113
      %s116 = sphi 0, %s115
      %s130 = sphi 0, %s116
      %s134 = sphi 0, %s134
      %s136 = sphi 0, %s134
      %s137 = sphi 0, %s136
      %s151 = sphi 0, %s137
      %s155 = sphi 0, %s155
      %s157 = sphi 0, %s155
      %s158 = sphi 0, %s157
      %s172 = sphi 0, %s158
      %s178 = sphi 0, %s180
      %s181 = sphi 0, %s178
      %s182 = sphi 0, %s181
      %s198 = sphi 0, %s182
    $region4: #{tpu_custom_call.1} parent=1 // loop_header_branch
      %19 = sbr.rel (%p17) target = $region8
    $region5: #{tpu_custom_call.1} parent=1 // loop_body
      %s21 = ssub.s32 %s16, 1
      %s22 = ssub.s32 %s16, 2
      %s23 = sadd.s32 %s16, 1
      %s24 = ssub.s32 %s16, %s23
      %p25 = scmp.eq.s32.totalorder %s24, 0
      %s27 = sadd.s32 %s26, 1
      %s28 = scalar_select %p25, %s26, %s27
      %p31 = pneg %p25
      %p32 = scmp.eq.s32.totalorder %s16, 1
      %p33 = por %p31, %p32
      %p34 = scmp.ne.s32.totalorder %s26, %s29
      %p35 = scmp.eq.s32.totalorder %s16, 0
      %p36 = por %p34, %p35
      %p37 = scmp.ne.s32.totalorder %s26, %s29
      %p38 = scmp.eq.s32.totalorder %s21, 1
      %p39 = por %p37, %p38
      %p40 = scmp.ne.s32.totalorder %s29, %s30
      %p41 = scmp.eq.s32.totalorder %s21, 0
      %p42 = por %p40, %p41
      %p43 = scmp.ne.s32.totalorder %s29, %s30
      %p44 = scmp.eq.s32.totalorder %s22, 1
      %p45 = por %p43, %p44
      %p47 = scmp.ne.s32.totalorder %s30, %s46
      %p48 = scmp.eq.s32.totalorder %s22, 0
      %p49 = por %p47, %p48
      %s51 = sadd.s32 %s50, 1
      %p54 = scmp.eq.s32.totalorder %s16, 1
      %p55 = scmp.ne.s32.totalorder %s50, %s52
      %p56 = scmp.eq.s32.totalorder %s16, 0
      %p57 = por %p55, %p56
      %p58 = scmp.ne.s32.totalorder %s50, %s52
      %p59 = scmp.eq.s32.totalorder %s21, 1
      %p60 = por %p58, %p59
      %p61 = scmp.ne.s32.totalorder %s52, %s53
      %p62 = scmp.eq.s32.totalorder %s21, 0
      %p63 = por %p61, %p62
      %p64 = scmp.ne.s32.totalorder %s52, %s53
      %p65 = scmp.eq.s32.totalorder %s22, 1
      %p66 = por %p64, %p65
      %p68 = scmp.ne.s32.totalorder %s53, %s67
      %p69 = scmp.eq.s32.totalorder %s22, 0
      %p70 = por %p68, %p69
      %s72 = sadd.s32 %s71, 1
      %p75 = scmp.eq.s32.totalorder %s16, 1
      %p76 = scmp.ne.s32.totalorder %s71, %s73
      %p77 = scmp.eq.s32.totalorder %s16, 0
      %p78 = por %p76, %p77
      %p79 = scmp.ne.s32.totalorder %s71, %s73
      %p80 = scmp.eq.s32.totalorder %s21, 1
      %p81 = por %p79, %p80
      %p82 = scmp.ne.s32.totalorder %s73, %s74
      %p83 = scmp.eq.s32.totalorder %s21, 0
      %p84 = por %p82, %p83
      %p85 = scmp.ne.s32.totalorder %s73, %s74
      %p86 = scmp.eq.s32.totalorder %s22, 1
      %p87 = por %p85, %p86
      %p89 = scmp.ne.s32.totalorder %s74, %s88
      %p90 = scmp.eq.s32.totalorder %s22, 0
      %p91 = por %p89, %p90
      %s93 = sadd.s32 %s92, 1
      %p96 = scmp.eq.s32.totalorder %s16, 1
      %p97 = scmp.ne.s32.totalorder %s92, %s94
      %p98 = scmp.eq.s32.totalorder %s16, 0
      %p99 = por %p97, %p98
      %p100 = scmp.ne.s32.totalorder %s92, %s94
      %p101 = scmp.eq.s32.totalorder %s21, 1
      %p102 = por %p100, %p101
      %p103 = scmp.ne.s32.totalorder %s94, %s95
      %p104 = scmp.eq.s32.totalorder %s21, 0
      %p105 = por %p103, %p104
      %p106 = scmp.ne.s32.totalorder %s94, %s95
      %p107 = scmp.eq.s32.totalorder %s22, 1
      %p108 = por %p106, %p107
      %p110 = scmp.ne.s32.totalorder %s95, %s109
      %p111 = scmp.eq.s32.totalorder %s22, 0
      %p112 = por %p110, %p111
      %s114 = sadd.s32 %s113, 1
      %p117 = scmp.eq.s32.totalorder %s16, 1
      %p118 = scmp.ne.s32.totalorder %s113, %s115
      %p119 = scmp.eq.s32.totalorder %s16, 0
      %p120 = por %p118, %p119
      %p121 = scmp.ne.s32.totalorder %s113, %s115
      %p122 = scmp.eq.s32.totalorder %s21, 1
      %p123 = por %p121, %p122
      %p124 = scmp.ne.s32.totalorder %s115, %s116
      %p125 = scmp.eq.s32.totalorder %s21, 0
      %p126 = por %p124, %p125
      %p127 = scmp.ne.s32.totalorder %s115, %s116
      %p128 = scmp.eq.s32.totalorder %s22, 1
      %p129 = por %p127, %p128
      %p131 = scmp.ne.s32.totalorder %s116, %s130
      %p132 = scmp.eq.s32.totalorder %s22, 0
      %p133 = por %p131, %p132
      %s135 = sadd.s32 %s134, 1
      %p138 = scmp.eq.s32.totalorder %s16, 1
      %p139 = scmp.ne.s32.totalorder %s134, %s136
      %p140 = scmp.eq.s32.totalorder %s16, 0
      %p141 = por %p139, %p140
      %p142 = scmp.ne.s32.totalorder %s134, %s136
      %p143 = scmp.eq.s32.totalorder %s21, 1
      %p144 = por %p142, %p143
      %p145 = scmp.ne.s32.totalorder %s136, %s137
      %p146 = scmp.eq.s32.totalorder %s21, 0
      %p147 = por %p145, %p146
      %p148 = scmp.ne.s32.totalorder %s136, %s137
      %p149 = scmp.eq.s32.totalorder %s22, 1
      %p150 = por %p148, %p149
      %p152 = scmp.ne.s32.totalorder %s137, %s151
      %p153 = scmp.eq.s32.totalorder %s22, 0
      %p154 = por %p152, %p153
      %s156 = sadd.s32 %s155, 1
      %p159 = scmp.eq.s32.totalorder %s16, 1
      %p160 = scmp.ne.s32.totalorder %s155, %s157
      %p161 = scmp.eq.s32.totalorder %s16, 0
      %p162 = por %p160, %p161
      %p163 = scmp.ne.s32.totalorder %s155, %s157
      %p164 = scmp.eq.s32.totalorder %s21, 1
      %p165 = por %p163, %p164
      %p166 = scmp.ne.s32.totalorder %s157, %s158
      %p167 = scmp.eq.s32.totalorder %s21, 0
      %p168 = por %p166, %p167
      %p169 = scmp.ne.s32.totalorder %s157, %s158
      %p170 = scmp.eq.s32.totalorder %s22, 1
      %p171 = por %p169, %p170
      %p173 = scmp.ne.s32.totalorder %s158, %s172
      %p174 = scmp.eq.s32.totalorder %s22, 0
      %p175 = por %p173, %p174
      %s176 = ssub.s32 %s16, %s23
      %p177 = scmp.eq.s32.totalorder %s176, 0
      %s179 = sadd.s32 %s178, 1
      %s180 = scalar_select %p177, %s178, %s179
      %p183 = pneg %p177
      %p184 = scmp.eq.s32.totalorder %s16, 1
      %p185 = por %p183, %p184
      %p186 = scmp.ne.s32.totalorder %s178, %s181
      %p187 = scmp.eq.s32.totalorder %s16, 0
      %p188 = por %p186, %p187
      %p189 = scmp.ne.s32.totalorder %s178, %s181
      %p190 = scmp.eq.s32.totalorder %s21, 1
      %p191 = por %p189, %p190
      %p192 = scmp.ne.s32.totalorder %s181, %s182
      %p193 = scmp.eq.s32.totalorder %s21, 0
      %p194 = por %p192, %p193
      %p195 = scmp.ne.s32.totalorder %s181, %s182
      %p196 = scmp.eq.s32.totalorder %s22, 1
      %p197 = por %p195, %p196
      %p199 = scmp.ne.s32.totalorder %s182, %s198
      %p200 = scmp.eq.s32.totalorder %s22, 0
      %p201 = por %p199, %p200
      %p202 = scmp.le.s32.totalorder 1, %s16
      %p203 = scmp.lt.s32.totalorder %s16, 3
      %p204 = pnand %p202, %p203
      %p205 = pneg %p204
      // Predicated region
      $region9: #{tpu_custom_call.1} parent=5 // pred_check
        _
      $region10: #{tpu_custom_call.1} parent=5 // pred_check_branch
        %207 = sbr.rel (%p204) target = $region12
      $region11: #{tpu_custom_call.1} parent=5 // pred_region
        %s208 = ssub.s32 %s16, 1
        // Predicated region
        $region13: #{tpu_custom_call.1} parent=11 // pred_check
          %p209 = pneg %p63
        $region14: #{tpu_custom_call.1} parent=11 // pred_check_branch
          %211 = sbr.rel (%p209) target = $region16
        $region15: #{tpu_custom_call.1} parent=11 // pred_region
          _
        $region16: #{tpu_custom_call.1} parent=11 // pred_fallthru
          _
        // Predicated region
        $region17: #{tpu_custom_call.1} parent=11 // pred_check
          %p212 = pneg %p84
        $region18: #{tpu_custom_call.1} parent=11 // pred_check_branch
          %214 = sbr.rel (%p212) target = $region20
        $region19: #{tpu_custom_call.1} parent=11 // pred_region
          _
        $region20: #{tpu_custom_call.1} parent=11 // pred_fallthru
          _
        // Predicated region
        $region21: #{tpu_custom_call.1} parent=11 // pred_check
          %p215 = pneg %p105
        $region22: #{tpu_custom_call.1} parent=11 // pred_check_branch
          %217 = sbr.rel (%p215) target = $region24
        $region23: #{tpu_custom_call.1} parent=11 // pred_region
          _
        $region24: #{tpu_custom_call.1} parent=11 // pred_fallthru
          _
        // Predicated region
        $region25: #{tpu_custom_call.1} parent=11 // pred_check
          %p218 = pneg %p126
        $region26: #{tpu_custom_call.1} parent=11 // pred_check_branch
          %220 = sbr.rel (%p218) target = $region28
        $region27: #{tpu_custom_call.1} parent=11 // pred_region
          _
        $region28: #{tpu_custom_call.1} parent=11 // pred_fallthru
          _
        // Predicated region
        $region29: #{tpu_custom_call.1} parent=11 // pred_check
          %p221 = pneg %p147
        $region30: #{tpu_custom_call.1} parent=11 // pred_check_branch
          %223 = sbr.rel (%p221) target = $region32
        $region31: #{tpu_custom_call.1} parent=11 // pred_region
          _
        $region32: #{tpu_custom_call.1} parent=11 // pred_fallthru
          _
        // Predicated region
        $region33: #{tpu_custom_call.1} parent=11 // pred_check
          %p224 = pneg %p168
        $region34: #{tpu_custom_call.1} parent=11 // pred_check_branch
          %226 = sbr.rel (%p224) target = $region36
        $region35: #{tpu_custom_call.1} parent=11 // pred_region
          _
        $region36: #{tpu_custom_call.1} parent=11 // pred_fallthru
          _
      $region12: #{tpu_custom_call.1} parent=5 // pred_fallthru
        _
      %p227 = scmp.lt.s32.totalorder %s16, 2
      // Predicated region
      $region37: #{tpu_custom_call.1} parent=5 // pred_check
        %p228 = pneg %p227
      $region38: #{tpu_custom_call.1} parent=5 // pred_check_branch
        %230 = sbr.rel (%p228) target = $region40
      $region39: #{tpu_custom_call.1} parent=5 // pred_region
        // Predicated region
        $region41: #{tpu_custom_call.1} parent=39 // pred_check
          %p231 = pneg %p36
        $region42: #{tpu_custom_call.1} parent=39 // pred_check_branch
          %233 = sbr.rel (%p231) target = $region44
        $region43: #{tpu_custom_call.1} parent=39 // pred_region
          %p234 = scmp.lt.s32.totalorder %s16, 1
          %s235 = scalar_select %p234, %s16, 1
          %s236 = smul.addr %s235, 6
          %s237 = smul.addr %s236, 4
          %s238 = scalar_lea.vmem %s0, %s237
        $region44: #{tpu_custom_call.1} parent=39 // pred_fallthru
          _
      $region40: #{tpu_custom_call.1} parent=5 // pred_fallthru
        _
      %p239 = scmp.le.s32.totalorder 1, %s16
      %p240 = scmp.lt.s32.totalorder %s16, 3
      %p241 = pnand %p239, %p240
      %p242 = pneg %p241
      // Predicated region
      $region45: #{tpu_custom_call.1} parent=5 // pred_check
        _
      $region46: #{tpu_custom_call.1} parent=5 // pred_check_branch
        %244 = sbr.rel (%p241) target = $region48
      $region47: #{tpu_custom_call.1} parent=5 // pred_region
        %s245 = ssub.s32 %s16, 1
        %p246 = scmp.lt.s32.totalorder %s21, 1
        %s247 = scalar_select %p246, %s21, 1
        %s248 = smul.addr %s247, 6
        %s249 = smul.addr %s248, 4
        %s250 = scalar_lea.vmem %s0, %s249
        %p251 = pneg %p42
        %p252 = pneg %p39
        %p253 = pneg %p63
        %p254 = pneg %p60
        %p255 = pneg %p84
        %p256 = pneg %p81
        %p257 = pneg %p105
        %p258 = pneg %p102
        %p259 = pneg %p126
        %p260 = pneg %p123
        %p261 = pneg %p147
        %p262 = pneg %p144
        %p263 = pneg %p168
        %p264 = pneg %p165
        %p265 = pneg %p194
        %p266 = pneg %p191
        %s267 = sand.u32 %s181, 1
        %s268 = scalar_lea.sflag [#allocation3], %s267
        %s269 = sand.u32 %s181, 1
        %s270 = smul.addr %s269, 32
        %s271 = scalar_lea.vmem [#allocation2], %s270
        %p272 = scmp.lt.s32.totalorder %s21, 1
        %s273 = scalar_select %p272, %s21, 1
        %s274 = smul.addr %s273, 6
        %s275 = smul.addr %s274, 4
        %s276 = scalar_lea.vmem %s0, %s275
        %v278 = vld [vmem:[%s1] sm:$0xf]
        %v279 = vld [vmem:[%s1 + $0x4] sm:$0xf]
        %v280 = vld [vmem:[%s1 + $0x8] sm:$0xf]
        %v281 = vld [vmem:[%s1 + $0xc] sm:$0xf]
        %v282 = vld [vmem:[%s1 + $0x10] sm:$0xf]
        %v283 = vld [vmem:[%s1 + $0x14] sm:$0xf]
        %v284 = vld [vmem:[%s276] sm:$0xff]
        %v285 = vld [vmem:[%s276 + $0x8] sm:$0xff]
        %v286 = vld [vmem:[%s276 + $0x10] sm:$0x11]
        %v293 = vunpack.c.l.b16 %v278
        %v294 = vunpack.c.l.b16 %v279
        %v295 = vunpack.c.l.b16 %v280
        %v296 = vunpack.c.l.b16 %v281
        %v297 = vunpack.c.l.b16 %v282
        %v298 = vunpack.c.l.b16 %v283
        %v299 = vpack.c.b16 %v294, %v293
        %v300 = vpack.c.b16 %v296, %v295
        %v301 = vpack.c.b16 %v298, %v297
        %v305 = vunpack.c.l.b16 %v284
        %v306 = vunpack.c.h.b16 %v284
        %v307 = vunpack.c.l.b16 %v285
        %v308 = vunpack.c.h.b16 %v285
        %v309 = vunpack.c.l.b16 %v286
        %v310 = vunpack.c.h.b16 %v286
        %v311 = vpack.c.b16 %v307, %v305
        %v312 = vpack.c.b16 %v308, %v306
        %v313 = vpack.c.b16 %v309, %v309
        %v314 = vpack.c.b16 %v310, %v310
        %vm317 = vcmask 138240
        %v319 = vsel %vm317, %v299, 0
        %v322 = vsel %vm317, %v300, 0
        %v325 = vsel %vm317, %v301, 0
        %vm327 = vcmask 1040384
        %v328 = vsel 0, 4294967295, 65535
        %v329 = vsel %vm327, %v328, 0
        %v331 = vand.u32 %v313, %v329
        %v334 = vand.u32 %v314, %v329
        %336 = vmatprep.subr.bf16.mxu0 0
        %337 = vmatpush1.bf16.msra.mxu0 0
        %338 = vmatprep.subr.bf16.mxu0 0
        %339 = vmatpush1.bf16.msra.mxu0 0
        %340 = vmatprep.subr.bf16.mxu0 0
        %341 = vmatpush1.bf16.msra.mxu0 0
        %342 = vmatprep.subr.bf16.mxu0 0
        %343 = vmatpush1.bf16.msra.mxu0 0
        %344 = vmatprep.subr.bf16.mxu0 0
        %345 = vmatpush1.bf16.msra.mxu0 0
        %346 = vmatprep.subr.bf16.mxu0 0
        %347 = vmatpush1.bf16.msra.mxu0 0
        %348 = vmatprep.subr.bf16.mxu0 %v334
        %349 = vmatpush1.bf16.msra.mxu0 %v331
        %350 = vmatprep.subr.bf16.mxu0 %v312
        %351 = vmatpush1.bf16.msra.mxu0 %v311
        %352 = vmatprep.subr.bf16.mxu0 0
        %353 = vmatpush2.bf16.msra.mxu0 0
        %354 = vmatprep.subr.bf16.mxu0 0
        %355 = vmatpush2.bf16.msra.mxu0 0
        %356 = vmatprep.subr.bf16.mxu0 0
        %357 = vmatpush2.bf16.msra.mxu0 0
        %358 = vmatprep.subr.bf16.mxu0 0
        %359 = vmatpush2.bf16.msra.mxu0 0
        %360 = vmatprep.subr.bf16.mxu0 0
        %361 = vmatpush2.bf16.msra.mxu0 0
        %362 = vmatprep.subr.bf16.mxu0 0
        %363 = vmatpush2.bf16.msra.mxu0 0
        %364 = vmatprep.subr.bf16.mxu0 0
        %365 = vmatpush2.bf16.msra.mxu0 0
        %366 = vmatprep.subr.bf16.mxu0 0
        %367 = vmatpush2.bf16.msra.mxu0 0
        %368 = vmatprep.mubr.bf16.mxu0 0
        %369 = vmatmul.mubr.bf16.gmra.mxu0 %v319
        %v370 = vpop.f32.mrf.mxu0
        %v371 = vadd.f32 0.0, %v370
        %v372 = vpop.f32.mrf.mxu0
        %v373 = vadd.f32 0.0, %v372
        %v374 = vpop.f32.mrf.mxu0
        %v375 = vadd.f32 0.0, %v374
        %v376 = vpop.f32.mrf.mxu0
        %v377 = vadd.f32 0.0, %v376
        %378 = vmatprep.mubr.bf16.mxu0 0
        %379 = vmatmul.mubr.bf16.gmra.mxu0 %v322
        %v380 = vpop.f32.mrf.mxu0
        %v381 = vadd.f32 0.0, %v380
        %v382 = vpop.f32.mrf.mxu0
        %v383 = vadd.f32 0.0, %v382
        %v384 = vpop.f32.mrf.mxu0
        %v385 = vadd.f32 0.0, %v384
        %v386 = vpop.f32.mrf.mxu0
        %v387 = vadd.f32 0.0, %v386
        %388 = vmatprep.mubr.bf16.mxu0 0
        %389 = vmatmul.mubr.bf16.gmra.mxu0 %v325
        %v390 = vpop.f32.mrf.mxu0
        %v391 = vadd.f32 0.0, %v390
        %v392 = vpop.f32.mrf.mxu0
        %v393 = vadd.f32 0.0, %v392
        %v394 = vpop.f32.mrf.mxu0
        %v395 = vadd.f32 0.0, %v394
        %v396 = vpop.f32.mrf.mxu0
        %v397 = vadd.f32 0.0, %v396
        %398 = vdwg.mxu0
        %v399 = vlaneseq
        %v400 = vand.u32 %v399, 127
        %v401 = vadd.s32 %v400, 128
        %v402 = vshra.s32 %v400, 4
        %v403 = vshra.s32 %v401, 4
        %v404 = vand.u32 %v400, 15
        %v405 = vand.u32 %v401, 15
        %vm406 = vcmp.ge.s32.totalorder %v402, 1
        %vm407 = vcmp.ge.s32.totalorder %v403, 1
        %vm408 = vcmp.lt.s32.totalorder %v402, 15
        %vm409 = vcmp.lt.s32.totalorder %v403, 15
        %vm410 = vcmp.ge.s32.totalorder %v404, 1
        %vm411 = vcmp.ge.s32.totalorder %v405, 1
        %vm412 = vcmp.lt.s32.totalorder %v404, 15
        %vm413 = vcmp.lt.s32.totalorder %v405, 15
        %v414 = vld [vmem:[%s2] sm:$0xff]
        %v415 = vld [vmem:[%s2 + $0x8] sm:$0xff]
        %v416 = vld [vmem:[%s2 + $0x10] sm:$0xff]
        %v417 = vld [vmem:[%s2 + $0x18] sm:$0xff]
        %v418 = vld [vmem:[%s2 + $0x20] sm:$0xff]
        %v419 = vld [vmem:[%s2 + $0x28] sm:$0xff]
        %421 = vset.pattern.permute.xlu0 4
        %422 = vperm.xlu0 %421, %v414
        %v423 = vpop.permute.xlu0 %422
        %426 = vset.pattern.permute.xlu0 4
        %427 = vperm.xlu0 %426, %v415
        %v428 = vpop.permute.xlu0 %427
        %431 = vset.pattern.permute.xlu0 4
        %432 = vperm.xlu0 %431, %v416
        %v433 = vpop.permute.xlu0 %432
        %436 = vset.pattern.permute.xlu0 4
        %437 = vperm.xlu0 %436, %v417
        %v438 = vpop.permute.xlu0 %437
        %441 = vset.pattern.permute.xlu0 4
        %442 = vperm.xlu0 %441, %v418
        %v443 = vpop.permute.xlu0 %442
        %446 = vset.pattern.permute.xlu0 4
        %447 = vperm.xlu0 %446, %v419
        %v448 = vpop.permute.xlu0 %447
        %v450 = vmul.f32 %v371, %v423
        %v451 = vmul.f32 %v373, %v423
        %v452 = vmul.f32 %v375, %v428
        %v453 = vmul.f32 %v377, %v428
        %v454 = vmul.f32 %v381, %v433
        %v455 = vmul.f32 %v383, %v433
        %v456 = vmul.f32 %v385, %v438
        %v457 = vmul.f32 %v387, %v438
        %v458 = vmul.f32 %v391, %v443
        %v459 = vmul.f32 %v393, %v443
        %v460 = vmul.f32 %v395, %v448
        %v461 = vmul.f32 %v397, %v448
        %v462 = vld [vmem:[%s3] sm:$0xff]
        %v463 = vld [vmem:[%s3 + $0x8] sm:$0xff]
        %v464 = vld [vmem:[%s3 + $0x10] sm:$0xff]
        %v465 = vld [vmem:[%s3 + $0x18] sm:$0xff]
        %v466 = vld [vmem:[%s3 + $0x20] sm:$0xff]
        %v467 = vld [vmem:[%s3 + $0x28] sm:$0xff]
        %469 = vset.pattern.permute.xlu0 0
        %470 = vperm.xlu0 %469, %v462
        %v471 = vpop.permute.xlu0 %470
        %474 = vset.pattern.permute.xlu0 0
        %475 = vperm.xlu0 %474, %v463
        %v476 = vpop.permute.xlu0 %475
        %479 = vset.pattern.permute.xlu0 0
        %480 = vperm.xlu0 %479, %v464
        %v481 = vpop.permute.xlu0 %480
        %484 = vset.pattern.permute.xlu0 0
        %485 = vperm.xlu0 %484, %v465
        %v486 = vpop.permute.xlu0 %485
        %489 = vset.pattern.permute.xlu0 0
        %490 = vperm.xlu0 %489, %v466
        %v491 = vpop.permute.xlu0 %490
        %494 = vset.pattern.permute.xlu0 0
        %495 = vperm.xlu0 %494, %v467
        %v496 = vpop.permute.xlu0 %495
        %v498 = vadd.f32 %v450, %v471
        %v499 = vadd.f32 %v451, %v471
        %v500 = vadd.f32 %v452, %v476
        %v501 = vadd.f32 %v453, %v476
        %v502 = vadd.f32 %v454, %v481
        %v503 = vadd.f32 %v455, %v481
        %v504 = vadd.f32 %v456, %v486
        %v505 = vadd.f32 %v457, %v486
        %v506 = vadd.f32 %v458, %v491
        %v507 = vadd.f32 %v459, %v491
        %v508 = vadd.f32 %v460, %v496
        %v509 = vadd.f32 %v461, %v496
        %510 = vrot.lane.b32.xlu0 %v371, 17
        %v511 = vpop.permute.xlu0 %510
        %512 = vrot.lane.b32.xlu0 %v375, 17
        %v513 = vpop.permute.xlu0 %512
        %514 = vrot.lane.b32.xlu0 %v381, 17
        %v515 = vpop.permute.xlu0 %514
        %516 = vrot.lane.b32.xlu0 %v385, 17
        %v517 = vpop.permute.xlu0 %516
        %518 = vrot.lane.b32.xlu0 %v391, 17
        %v519 = vpop.permute.xlu0 %518
        %520 = vrot.lane.b32.xlu0 %v395, 17
        %v521 = vpop.permute.xlu0 %520
        %522 = vrot.lane.b32.xlu0 %v373, 17
        %v523 = vpop.permute.xlu0 %522
        %524 = vrot.lane.b32.xlu0 %v377, 17
        %v525 = vpop.permute.xlu0 %524
        %526 = vrot.lane.b32.xlu0 %v383, 17
        %v527 = vpop.permute.xlu0 %526
        %528 = vrot.lane.b32.xlu0 %v387, 17
        %v529 = vpop.permute.xlu0 %528
        %530 = vrot.lane.b32.xlu0 %v393, 17
        %v531 = vpop.permute.xlu0 %530
        %532 = vrot.lane.b32.xlu0 %v397, 17
        %v533 = vpop.permute.xlu0 %532
        %vm534 = vcmp.lt.s32.totalorder %v400, 17
        %v535 = vsel %vm534, %v511, %v523
        %v536 = vsel %vm534, %v513, %v525
        %v537 = vsel %vm534, %v515, %v527
        %v538 = vsel %vm534, %v517, %v529
        %v539 = vsel %vm534, %v519, %v531
        %v540 = vsel %vm534, %v521, %v533
        %v541 = vsel %vm534, %v523, %v511
        %v542 = vsel %vm534, %v525, %v513
        %v543 = vsel %vm534, %v527, %v515
        %v544 = vsel %vm534, %v529, %v517
        %v545 = vsel %vm534, %v531, %v519
        %v546 = vsel %vm534, %v533, %v521
        %vm547 = vmand %vm406, %vm410
        %vm548 = vmand %vm407, %vm411
        %v549 = vsel %vm547, 1, 0
        %v550 = vsel %vm548, 1, 0
        %vm551 = vcmp.eq.s32.totalorder %v549, 1
        %vm552 = vcmp.eq.s32.totalorder %v550, 1
        %v553 = vsel %vm551, %v541, 0.0
        %v554 = vsel %vm552, %v535, 0.0
        %v555 = vsel %vm551, %v542, 0.0
        %v556 = vsel %vm552, %v536, 0.0
        %v557 = vsel %vm551, %v543, 0.0
        %v558 = vsel %vm552, %v537, 0.0
        %v559 = vsel %vm551, %v544, 0.0
        %v560 = vsel %vm552, %v538, 0.0
        %v561 = vsel %vm551, %v545, 0.0
        %v562 = vsel %vm552, %v539, 0.0
        %v563 = vsel %vm551, %v546, 0.0
        %v564 = vsel %vm552, %v540, 0.0
        %565 = vset.pattern.permute.xlu0 0
        %566 = vperm.xlu0 %565, %v414
        %v567 = vpop.permute.xlu0 %566
        %569 = vset.pattern.permute.xlu0 0
        %570 = vperm.xlu0 %569, %v415
        %v571 = vpop.permute.xlu0 %570
        %573 = vset.pattern.permute.xlu0 0
        %574 = vperm.xlu0 %573, %v416
        %v575 = vpop.permute.xlu0 %574
        %577 = vset.pattern.permute.xlu0 0
        %578 = vperm.xlu0 %577, %v417
        %v579 = vpop.permute.xlu0 %578
        %581 = vset.pattern.permute.xlu0 0
        %582 = vperm.xlu0 %581, %v418
        %v583 = vpop.permute.xlu0 %582
        %585 = vset.pattern.permute.xlu0 0
        %586 = vperm.xlu0 %585, %v419
        %v587 = vpop.permute.xlu0 %586
        %v589 = vmul.f32 %v553, %v567
        %v590 = vmul.f32 %v554, %v567
        %v591 = vmul.f32 %v555, %v571
        %v592 = vmul.f32 %v556, %v571
        %v593 = vmul.f32 %v557, %v575
        %v594 = vmul.f32 %v558, %v575
        %v595 = vmul.f32 %v559, %v579
        %v596 = vmul.f32 %v560, %v579
        %v597 = vmul.f32 %v561, %v583
        %v598 = vmul.f32 %v562, %v583
        %v599 = vmul.f32 %v563, %v587
        %v600 = vmul.f32 %v564, %v587
        %v601 = vadd.f32 %v498, %v589
        %v602 = vadd.f32 %v499, %v590
        %v603 = vadd.f32 %v500, %v591
        %v604 = vadd.f32 %v501, %v592
        %v605 = vadd.f32 %v502, %v593
        %v606 = vadd.f32 %v503, %v594
        %v607 = vadd.f32 %v504, %v595
        %v608 = vadd.f32 %v505, %v596
        %v609 = vadd.f32 %v506, %v597
        %v610 = vadd.f32 %v507, %v598
        %v611 = vadd.f32 %v508, %v599
        %v612 = vadd.f32 %v509, %v600
        %613 = vrot.lane.b32.xlu0 %v371, 16
        %v614 = vpop.permute.xlu0 %613
        %615 = vrot.lane.b32.xlu0 %v375, 16
        %v616 = vpop.permute.xlu0 %615
        %617 = vrot.lane.b32.xlu0 %v381, 16
        %v618 = vpop.permute.xlu0 %617
        %619 = vrot.lane.b32.xlu0 %v385, 16
        %v620 = vpop.permute.xlu0 %619
        %621 = vrot.lane.b32.xlu0 %v391, 16
        %v622 = vpop.permute.xlu0 %621
        %623 = vrot.lane.b32.xlu0 %v395, 16
        %v624 = vpop.permute.xlu0 %623
        %625 = vrot.lane.b32.xlu0 %v373, 16
        %v626 = vpop.permute.xlu0 %625
        %627 = vrot.lane.b32.xlu0 %v377, 16
        %v628 = vpop.permute.xlu0 %627
        %629 = vrot.lane.b32.xlu0 %v383, 16
        %v630 = vpop.permute.xlu0 %629
        %631 = vrot.lane.b32.xlu0 %v387, 16
        %v632 = vpop.permute.xlu0 %631
        %633 = vrot.lane.b32.xlu0 %v393, 16
        %v634 = vpop.permute.xlu0 %633
        %635 = vrot.lane.b32.xlu0 %v397, 16
        %v636 = vpop.permute.xlu0 %635
        %vm637 = vcmp.lt.s32.totalorder %v400, 16
        %v638 = vsel %vm637, %v614, %v626
        %v639 = vsel %vm637, %v616, %v628
        %v640 = vsel %vm637, %v618, %v630
        %v641 = vsel %vm637, %v620, %v632
        %v642 = vsel %vm637, %v622, %v634
        %v643 = vsel %vm637, %v624, %v636
        %v644 = vsel %vm637, %v626, %v614
        %v645 = vsel %vm637, %v628, %v616
        %v646 = vsel %vm637, %v630, %v618
        %v647 = vsel %vm637, %v632, %v620
        %v648 = vsel %vm637, %v634, %v622
        %v649 = vsel %vm637, %v636, %v624
        %v650 = vsel %vm406, 1, 0
        %v651 = vsel %vm407, 1, 0
        %vm652 = vcmp.eq.s32.totalorder %v650, 1
        %vm653 = vcmp.eq.s32.totalorder %v651, 1
        %v654 = vsel %vm652, %v644, 0.0
        %v655 = vsel %vm653, %v638, 0.0
        %v656 = vsel %vm652, %v645, 0.0
        %v657 = vsel %vm653, %v639, 0.0
        %v658 = vsel %vm652, %v646, 0.0
        %v659 = vsel %vm653, %v640, 0.0
        %v660 = vsel %vm652, %v647, 0.0
        %v661 = vsel %vm653, %v641, 0.0
        %v662 = vsel %vm652, %v648, 0.0
        %v663 = vsel %vm653, %v642, 0.0
        %v664 = vsel %vm652, %v649, 0.0
        %v665 = vsel %vm653, %v643, 0.0
        %666 = vset.pattern.permute.xlu0 1
        %667 = vperm.xlu0 %666, %v414
        %v668 = vpop.permute.xlu0 %667
        %670 = vset.pattern.permute.xlu0 1
        %671 = vperm.xlu0 %670, %v415
        %v672 = vpop.permute.xlu0 %671
        %674 = vset.pattern.permute.xlu0 1
        %675 = vperm.xlu0 %674, %v416
        %v676 = vpop.permute.xlu0 %675
        %678 = vset.pattern.permute.xlu0 1
        %679 = vperm.xlu0 %678, %v417
        %v680 = vpop.permute.xlu0 %679
        %682 = vset.pattern.permute.xlu0 1
        %683 = vperm.xlu0 %682, %v418
        %v684 = vpop.permute.xlu0 %683
        %686 = vset.pattern.permute.xlu0 1
        %687 = vperm.xlu0 %686, %v419
        %v688 = vpop.permute.xlu0 %687
        %v690 = vmul.f32 %v654, %v668
        %v691 = vmul.f32 %v655, %v668
        %v692 = vmul.f32 %v656, %v672
        %v693 = vmul.f32 %v657, %v672
        %v694 = vmul.f32 %v658, %v676
        %v695 = vmul.f32 %v659, %v676
        %v696 = vmul.f32 %v660, %v680
        %v697 = vmul.f32 %v661, %v680
        %v698 = vmul.f32 %v662, %v684
        %v699 = vmul.f32 %v663, %v684
        %v700 = vmul.f32 %v664, %v688
        %v701 = vmul.f32 %v665, %v688
        %v702 = vadd.f32 %v601, %v690
        %v703 = vadd.f32 %v602, %v691
        %v704 = vadd.f32 %v603, %v692
        %v705 = vadd.f32 %v604, %v693
        %v706 = vadd.f32 %v605, %v694
        %v707 = vadd.f32 %v606, %v695
        %v708 = vadd.f32 %v607, %v696
        %v709 = vadd.f32 %v608, %v697
        %v710 = vadd.f32 %v609, %v698
        %v711 = vadd.f32 %v610, %v699
        %v712 = vadd.f32 %v611, %v700
        %v713 = vadd.f32 %v612, %v701
        %714 = vrot.lane.b32.xlu0 %v371, 15
        %v715 = vpop.permute.xlu0 %714
        %716 = vrot.lane.b32.xlu0 %v375, 15
        %v717 = vpop.permute.xlu0 %716
        %718 = vrot.lane.b32.xlu0 %v381, 15
        %v719 = vpop.permute.xlu0 %718
        %720 = vrot.lane.b32.xlu0 %v385, 15
        %v721 = vpop.permute.xlu0 %720
        %722 = vrot.lane.b32.xlu0 %v391, 15
        %v723 = vpop.permute.xlu0 %722
        %724 = vrot.lane.b32.xlu0 %v395, 15
        %v725 = vpop.permute.xlu0 %724
        %726 = vrot.lane.b32.xlu0 %v373, 15
        %v727 = vpop.permute.xlu0 %726
        %728 = vrot.lane.b32.xlu0 %v377, 15
        %v729 = vpop.permute.xlu0 %728
        %730 = vrot.lane.b32.xlu0 %v383, 15
        %v731 = vpop.permute.xlu0 %730
        %732 = vrot.lane.b32.xlu0 %v387, 15
        %v733 = vpop.permute.xlu0 %732
        %734 = vrot.lane.b32.xlu0 %v393, 15
        %v735 = vpop.permute.xlu0 %734
        %736 = vrot.lane.b32.xlu0 %v397, 15
        %v737 = vpop.permute.xlu0 %736
        %vm738 = vcmp.lt.s32.totalorder %v400, 15
        %v739 = vsel %vm738, %v715, %v727
        %v740 = vsel %vm738, %v717, %v729
        %v741 = vsel %vm738, %v719, %v731
        %v742 = vsel %vm738, %v721, %v733
        %v743 = vsel %vm738, %v723, %v735
        %v744 = vsel %vm738, %v725, %v737
        %v745 = vsel %vm738, %v727, %v715
        %v746 = vsel %vm738, %v729, %v717
        %v747 = vsel %vm738, %v731, %v719
        %v748 = vsel %vm738, %v733, %v721
        %v749 = vsel %vm738, %v735, %v723
        %v750 = vsel %vm738, %v737, %v725
        %vm751 = vmand %vm406, %vm412
        %vm752 = vmand %vm407, %vm413
        %v753 = vsel %vm751, 1, 0
        %v754 = vsel %vm752, 1, 0
        %vm755 = vcmp.eq.s32.totalorder %v753, 1
        %vm756 = vcmp.eq.s32.totalorder %v754, 1
        %v757 = vsel %vm755, %v745, 0.0
        %v758 = vsel %vm756, %v739, 0.0
        %v759 = vsel %vm755, %v746, 0.0
        %v760 = vsel %vm756, %v740, 0.0
        %v761 = vsel %vm755, %v747, 0.0
        %v762 = vsel %vm756, %v741, 0.0
        %v763 = vsel %vm755, %v748, 0.0
        %v764 = vsel %vm756, %v742, 0.0
        %v765 = vsel %vm755, %v749, 0.0
        %v766 = vsel %vm756, %v743, 0.0
        %v767 = vsel %vm755, %v750, 0.0
        %v768 = vsel %vm756, %v744, 0.0
        %769 = vset.pattern.permute.xlu0 2
        %770 = vperm.xlu0 %769, %v414
        %v771 = vpop.permute.xlu0 %770
        %773 = vset.pattern.permute.xlu0 2
        %774 = vperm.xlu0 %773, %v415
        %v775 = vpop.permute.xlu0 %774
        %777 = vset.pattern.permute.xlu0 2
        %778 = vperm.xlu0 %777, %v416
        %v779 = vpop.permute.xlu0 %778
        %781 = vset.pattern.permute.xlu0 2
        %782 = vperm.xlu0 %781, %v417
        %v783 = vpop.permute.xlu0 %782
        %785 = vset.pattern.permute.xlu0 2
        %786 = vperm.xlu0 %785, %v418
        %v787 = vpop.permute.xlu0 %786
        %789 = vset.pattern.permute.xlu0 2
        %790 = vperm.xlu0 %789, %v419
        %v791 = vpop.permute.xlu0 %790
        %v793 = vmul.f32 %v757, %v771
        %v794 = vmul.f32 %v758, %v771
        %v795 = vmul.f32 %v759, %v775
        %v796 = vmul.f32 %v760, %v775
        %v797 = vmul.f32 %v761, %v779
        %v798 = vmul.f32 %v762, %v779
        %v799 = vmul.f32 %v763, %v783
        %v800 = vmul.f32 %v764, %v783
        %v801 = vmul.f32 %v765, %v787
        %v802 = vmul.f32 %v766, %v787
        %v803 = vmul.f32 %v767, %v791
        %v804 = vmul.f32 %v768, %v791
        %v805 = vadd.f32 %v702, %v793
        %v806 = vadd.f32 %v703, %v794
        %v807 = vadd.f32 %v704, %v795
        %v808 = vadd.f32 %v705, %v796
        %v809 = vadd.f32 %v706, %v797
        %v810 = vadd.f32 %v707, %v798
        %v811 = vadd.f32 %v708, %v799
        %v812 = vadd.f32 %v709, %v800
        %v813 = vadd.f32 %v710, %v801
        %v814 = vadd.f32 %v711, %v802
        %v815 = vadd.f32 %v712, %v803
        %v816 = vadd.f32 %v713, %v804
        %817 = vrot.lane.b32.xlu0 %v371, 1
        %v818 = vpop.permute.xlu0 %817
        %819 = vrot.lane.b32.xlu0 %v375, 1
        %v820 = vpop.permute.xlu0 %819
        %821 = vrot.lane.b32.xlu0 %v381, 1
        %v822 = vpop.permute.xlu0 %821
        %823 = vrot.lane.b32.xlu0 %v385, 1
        %v824 = vpop.permute.xlu0 %823
        %825 = vrot.lane.b32.xlu0 %v391, 1
        %v826 = vpop.permute.xlu0 %825
        %827 = vrot.lane.b32.xlu0 %v395, 1
        %v828 = vpop.permute.xlu0 %827
        %829 = vrot.lane.b32.xlu0 %v373, 1
        %v830 = vpop.permute.xlu0 %829
        %831 = vrot.lane.b32.xlu0 %v377, 1
        %v832 = vpop.permute.xlu0 %831
        %833 = vrot.lane.b32.xlu0 %v383, 1
        %v834 = vpop.permute.xlu0 %833
        %835 = vrot.lane.b32.xlu0 %v387, 1
        %v836 = vpop.permute.xlu0 %835
        %837 = vrot.lane.b32.xlu0 %v393, 1
        %v838 = vpop.permute.xlu0 %837
        %839 = vrot.lane.b32.xlu0 %v397, 1
        %v840 = vpop.permute.xlu0 %839
        %vm841 = vcmp.lt.s32.totalorder %v400, 1
        %v842 = vsel %vm841, %v818, %v830
        %v843 = vsel %vm841, %v820, %v832
        %v844 = vsel %vm841, %v822, %v834
        %v845 = vsel %vm841, %v824, %v836
        %v846 = vsel %vm841, %v826, %v838
        %v847 = vsel %vm841, %v828, %v840
        %v848 = vsel %vm841, %v830, %v818
        %v849 = vsel %vm841, %v832, %v820
        %v850 = vsel %vm841, %v834, %v822
        %v851 = vsel %vm841, %v836, %v824
        %v852 = vsel %vm841, %v838, %v826
        %v853 = vsel %vm841, %v840, %v828
        %v854 = vsel %vm410, 1, 0
        %v855 = vsel %vm411, 1, 0
        %vm856 = vcmp.eq.s32.totalorder %v854, 1
        %vm857 = vcmp.eq.s32.totalorder %v855, 1
        %v858 = vsel %vm856, %v848, 0.0
        %v859 = vsel %vm857, %v842, 0.0
        %v860 = vsel %vm856, %v849, 0.0
        %v861 = vsel %vm857, %v843, 0.0
        %v862 = vsel %vm856, %v850, 0.0
        %v863 = vsel %vm857, %v844, 0.0
        %v864 = vsel %vm856, %v851, 0.0
        %v865 = vsel %vm857, %v845, 0.0
        %v866 = vsel %vm856, %v852, 0.0
        %v867 = vsel %vm857, %v846, 0.0
        %v868 = vsel %vm856, %v853, 0.0
        %v869 = vsel %vm857, %v847, 0.0
        %870 = vset.pattern.permute.xlu0 3
        %871 = vperm.xlu0 %870, %v414
        %v872 = vpop.permute.xlu0 %871
        %874 = vset.pattern.permute.xlu0 3
        %875 = vperm.xlu0 %874, %v415
        %v876 = vpop.permute.xlu0 %875
        %878 = vset.pattern.permute.xlu0 3
        %879 = vperm.xlu0 %878, %v416
        %v880 = vpop.permute.xlu0 %879
        %882 = vset.pattern.permute.xlu0 3
        %883 = vperm.xlu0 %882, %v417
        %v884 = vpop.permute.xlu0 %883
        %886 = vset.pattern.permute.xlu0 3
        %887 = vperm.xlu0 %886, %v418
        %v888 = vpop.permute.xlu0 %887
        %890 = vset.pattern.permute.xlu0 3
        %891 = vperm.xlu0 %890, %v419
        %v892 = vpop.permute.xlu0 %891
        %v894 = vmul.f32 %v858, %v872
        %v895 = vmul.f32 %v859, %v872
        %v896 = vmul.f32 %v860, %v876
        %v897 = vmul.f32 %v861, %v876
        %v898 = vmul.f32 %v862, %v880
        %v899 = vmul.f32 %v863, %v880
        %v900 = vmul.f32 %v864, %v884
        %v901 = vmul.f32 %v865, %v884
        %v902 = vmul.f32 %v866, %v888
        %v903 = vmul.f32 %v867, %v888
        %v904 = vmul.f32 %v868, %v892
        %v905 = vmul.f32 %v869, %v892
        %v906 = vadd.f32 %v805, %v894
        %v907 = vadd.f32 %v806, %v895
        %v908 = vadd.f32 %v807, %v896
        %v909 = vadd.f32 %v808, %v897
        %v910 = vadd.f32 %v809, %v898
        %v911 = vadd.f32 %v810, %v899
        %v912 = vadd.f32 %v811, %v900
        %v913 = vadd.f32 %v812, %v901
        %v914 = vadd.f32 %v813, %v902
        %v915 = vadd.f32 %v814, %v903
        %v916 = vadd.f32 %v815, %v904
        %v917 = vadd.f32 %v816, %v905
        %918 = vrot.lane.b32.xlu0 %v371, 127
        %v919 = vpop.permute.xlu0 %918
        %920 = vrot.lane.b32.xlu0 %v375, 127
        %v921 = vpop.permute.xlu0 %920
        %922 = vrot.lane.b32.xlu0 %v381, 127
        %v923 = vpop.permute.xlu0 %922
        %924 = vrot.lane.b32.xlu0 %v385, 127
        %v925 = vpop.permute.xlu0 %924
        %926 = vrot.lane.b32.xlu0 %v391, 127
        %v927 = vpop.permute.xlu0 %926
        %928 = vrot.lane.b32.xlu0 %v395, 127
        %v929 = vpop.permute.xlu0 %928
        %930 = vrot.lane.b32.xlu0 %v373, 127
        %v931 = vpop.permute.xlu0 %930
        %932 = vrot.lane.b32.xlu0 %v377, 127
        %v933 = vpop.permute.xlu0 %932
        %934 = vrot.lane.b32.xlu0 %v383, 127
        %v935 = vpop.permute.xlu0 %934
        %936 = vrot.lane.b32.xlu0 %v387, 127
        %v937 = vpop.permute.xlu0 %936
        %938 = vrot.lane.b32.xlu0 %v393, 127
        %v939 = vpop.permute.xlu0 %938
        %940 = vrot.lane.b32.xlu0 %v397, 127
        %v941 = vpop.permute.xlu0 %940
        %vm942 = vcmp.lt.s32.totalorder %v400, 127
        %v943 = vsel %vm942, %v919, %v931
        %v944 = vsel %vm942, %v921, %v933
        %v945 = vsel %vm942, %v923, %v935
        %v946 = vsel %vm942, %v925, %v937
        %v947 = vsel %vm942, %v927, %v939
        %v948 = vsel %vm942, %v929, %v941
        %v949 = vsel %vm942, %v931, %v919
        %v950 = vsel %vm942, %v933, %v921
        %v951 = vsel %vm942, %v935, %v923
        %v952 = vsel %vm942, %v937, %v925
        %v953 = vsel %vm942, %v939, %v927
        %v954 = vsel %vm942, %v941, %v929
        %v955 = vsel %vm412, 1, 0
        %v956 = vsel %vm413, 1, 0
        %vm957 = vcmp.eq.s32.totalorder %v955, 1
        %vm958 = vcmp.eq.s32.totalorder %v956, 1
        %v959 = vsel %vm957, %v943, 0.0
        %v960 = vsel %vm958, %v949, 0.0
        %v961 = vsel %vm957, %v944, 0.0
        %v962 = vsel %vm958, %v950, 0.0
        %v963 = vsel %vm957, %v945, 0.0
        %v964 = vsel %vm958, %v951, 0.0
        %v965 = vsel %vm957, %v946, 0.0
        %v966 = vsel %vm958, %v952, 0.0
        %v967 = vsel %vm957, %v947, 0.0
        %v968 = vsel %vm958, %v953, 0.0
        %v969 = vsel %vm957, %v948, 0.0
        %v970 = vsel %vm958, %v954, 0.0
        %971 = vset.pattern.permute.xlu0 5
        %972 = vperm.xlu0 %971, %v414
        %v973 = vpop.permute.xlu0 %972
        %975 = vset.pattern.permute.xlu0 5
        %976 = vperm.xlu0 %975, %v415
        %v977 = vpop.permute.xlu0 %976
        %979 = vset.pattern.permute.xlu0 5
        %980 = vperm.xlu0 %979, %v416
        %v981 = vpop.permute.xlu0 %980
        %983 = vset.pattern.permute.xlu0 5
        %984 = vperm.xlu0 %983, %v417
        %v985 = vpop.permute.xlu0 %984
        %987 = vset.pattern.permute.xlu0 5
        %988 = vperm.xlu0 %987, %v418
        %v989 = vpop.permute.xlu0 %988
        %991 = vset.pattern.permute.xlu0 5
        %992 = vperm.xlu0 %991, %v419
        %v993 = vpop.permute.xlu0 %992
        %v995 = vmul.f32 %v959, %v973
        %v996 = vmul.f32 %v960, %v973
        %v997 = vmul.f32 %v961, %v977
        %v998 = vmul.f32 %v962, %v977
        %v999 = vmul.f32 %v963, %v981
        %v1000 = vmul.f32 %v964, %v981
        %v1001 = vmul.f32 %v965, %v985
        %v1002 = vmul.f32 %v966, %v985
        %v1003 = vmul.f32 %v967, %v989
        %v1004 = vmul.f32 %v968, %v989
        %v1005 = vmul.f32 %v969, %v993
        %v1006 = vmul.f32 %v970, %v993
        %v1007 = vadd.f32 %v906, %v995
        %v1008 = vadd.f32 %v907, %v996
        %v1009 = vadd.f32 %v908, %v997
        %v1010 = vadd.f32 %v909, %v998
        %v1011 = vadd.f32 %v910, %v999
        %v1012 = vadd.f32 %v911, %v1000
        %v1013 = vadd.f32 %v912, %v1001
        %v1014 = vadd.f32 %v913, %v1002
        %v1015 = vadd.f32 %v914, %v1003
        %v1016 = vadd.f32 %v915, %v1004
        %v1017 = vadd.f32 %v916, %v1005
        %v1018 = vadd.f32 %v917, %v1006
        %1019 = vrot.lane.b32.xlu0 %v371, 113
        %v1020 = vpop.permute.xlu0 %1019
        %1021 = vrot.lane.b32.xlu0 %v375, 113
        %v1022 = vpop.permute.xlu0 %1021
        %1023 = vrot.lane.b32.xlu0 %v381, 113
        %v1024 = vpop.permute.xlu0 %1023
        %1025 = vrot.lane.b32.xlu0 %v385, 113
        %v1026 = vpop.permute.xlu0 %1025
        %1027 = vrot.lane.b32.xlu0 %v391, 113
        %v1028 = vpop.permute.xlu0 %1027
        %1029 = vrot.lane.b32.xlu0 %v395, 113
        %v1030 = vpop.permute.xlu0 %1029
        %1031 = vrot.lane.b32.xlu0 %v373, 113
        %v1032 = vpop.permute.xlu0 %1031
        %1033 = vrot.lane.b32.xlu0 %v377, 113
        %v1034 = vpop.permute.xlu0 %1033
        %1035 = vrot.lane.b32.xlu0 %v383, 113
        %v1036 = vpop.permute.xlu0 %1035
        %1037 = vrot.lane.b32.xlu0 %v387, 113
        %v1038 = vpop.permute.xlu0 %1037
        %1039 = vrot.lane.b32.xlu0 %v393, 113
        %v1040 = vpop.permute.xlu0 %1039
        %1041 = vrot.lane.b32.xlu0 %v397, 113
        %v1042 = vpop.permute.xlu0 %1041
        %vm1043 = vcmp.lt.s32.totalorder %v400, 113
        %v1044 = vsel %vm1043, %v1020, %v1032
        %v1045 = vsel %vm1043, %v1022, %v1034
        %v1046 = vsel %vm1043, %v1024, %v1036
        %v1047 = vsel %vm1043, %v1026, %v1038
        %v1048 = vsel %vm1043, %v1028, %v1040
        %v1049 = vsel %vm1043, %v1030, %v1042
        %v1050 = vsel %vm1043, %v1032, %v1020
        %v1051 = vsel %vm1043, %v1034, %v1022
        %v1052 = vsel %vm1043, %v1036, %v1024
        %v1053 = vsel %vm1043, %v1038, %v1026
        %v1054 = vsel %vm1043, %v1040, %v1028
        %v1055 = vsel %vm1043, %v1042, %v1030
        %vm1056 = vmand %vm408, %vm410
        %vm1057 = vmand %vm409, %vm411
        %v1058 = vsel %vm1056, 1, 0
        %v1059 = vsel %vm1057, 1, 0
        %vm1060 = vcmp.eq.s32.totalorder %v1058, 1
        %vm1061 = vcmp.eq.s32.totalorder %v1059, 1
        %v1062 = vsel %vm1060, %v1044, 0.0
        %v1063 = vsel %vm1061, %v1050, 0.0
        %v1064 = vsel %vm1060, %v1045, 0.0
        %v1065 = vsel %vm1061, %v1051, 0.0
        %v1066 = vsel %vm1060, %v1046, 0.0
        %v1067 = vsel %vm1061, %v1052, 0.0
        %v1068 = vsel %vm1060, %v1047, 0.0
        %v1069 = vsel %vm1061, %v1053, 0.0
        %v1070 = vsel %vm1060, %v1048, 0.0
        %v1071 = vsel %vm1061, %v1054, 0.0
        %v1072 = vsel %vm1060, %v1049, 0.0
        %v1073 = vsel %vm1061, %v1055, 0.0
        %1074 = vset.pattern.permute.xlu0 6
        %1075 = vperm.xlu0 %1074, %v414
        %v1076 = vpop.permute.xlu0 %1075
        %1078 = vset.pattern.permute.xlu0 6
        %1079 = vperm.xlu0 %1078, %v415
        %v1080 = vpop.permute.xlu0 %1079
        %1082 = vset.pattern.permute.xlu0 6
        %1083 = vperm.xlu0 %1082, %v416
        %v1084 = vpop.permute.xlu0 %1083
        %1086 = vset.pattern.permute.xlu0 6
        %1087 = vperm.xlu0 %1086, %v417
        %v1088 = vpop.permute.xlu0 %1087
        %1090 = vset.pattern.permute.xlu0 6
        %1091 = vperm.xlu0 %1090, %v418
        %v1092 = vpop.permute.xlu0 %1091
        %1094 = vset.pattern.permute.xlu0 6
        %1095 = vperm.xlu0 %1094, %v419
        %v1096 = vpop.permute.xlu0 %1095
        %v1098 = vmul.f32 %v1062, %v1076
        %v1099 = vmul.f32 %v1063, %v1076
        %v1100 = vmul.f32 %v1064, %v1080
        %v1101 = vmul.f32 %v1065, %v1080
        %v1102 = vmul.f32 %v1066, %v1084
        %v1103 = vmul.f32 %v1067, %v1084
        %v1104 = vmul.f32 %v1068, %v1088
        %v1105 = vmul.f32 %v1069, %v1088
        %v1106 = vmul.f32 %v1070, %v1092
        %v1107 = vmul.f32 %v1071, %v1092
        %v1108 = vmul.f32 %v1072, %v1096
        %v1109 = vmul.f32 %v1073, %v1096
        %v1110 = vadd.f32 %v1007, %v1098
        %v1111 = vadd.f32 %v1008, %v1099
        %v1112 = vadd.f32 %v1009, %v1100
        %v1113 = vadd.f32 %v1010, %v1101
        %v1114 = vadd.f32 %v1011, %v1102
        %v1115 = vadd.f32 %v1012, %v1103
        %v1116 = vadd.f32 %v1013, %v1104
        %v1117 = vadd.f32 %v1014, %v1105
        %v1118 = vadd.f32 %v1015, %v1106
        %v1119 = vadd.f32 %v1016, %v1107
        %v1120 = vadd.f32 %v1017, %v1108
        %v1121 = vadd.f32 %v1018, %v1109
        %1122 = vrot.lane.b32.xlu0 %v371, 112
        %v1123 = vpop.permute.xlu0 %1122
        %1124 = vrot.lane.b32.xlu0 %v375, 112
        %v1125 = vpop.permute.xlu0 %1124
        %1126 = vrot.lane.b32.xlu0 %v381, 112
        %v1127 = vpop.permute.xlu0 %1126
        %1128 = vrot.lane.b32.xlu0 %v385, 112
        %v1129 = vpop.permute.xlu0 %1128
        %1130 = vrot.lane.b32.xlu0 %v391, 112
        %v1131 = vpop.permute.xlu0 %1130
        %1132 = vrot.lane.b32.xlu0 %v395, 112
        %v1133 = vpop.permute.xlu0 %1132
        %1134 = vrot.lane.b32.xlu0 %v373, 112
        %v1135 = vpop.permute.xlu0 %1134
        %1136 = vrot.lane.b32.xlu0 %v377, 112
        %v1137 = vpop.permute.xlu0 %1136
        %1138 = vrot.lane.b32.xlu0 %v383, 112
        %v1139 = vpop.permute.xlu0 %1138
        %1140 = vrot.lane.b32.xlu0 %v387, 112
        %v1141 = vpop.permute.xlu0 %1140
        %1142 = vrot.lane.b32.xlu0 %v393, 112
        %v1143 = vpop.permute.xlu0 %1142
        %1144 = vrot.lane.b32.xlu0 %v397, 112
        %v1145 = vpop.permute.xlu0 %1144
        %vm1146 = vcmp.lt.s32.totalorder %v400, 112
        %v1147 = vsel %vm1146, %v1123, %v1135
        %v1148 = vsel %vm1146, %v1125, %v1137
        %v1149 = vsel %vm1146, %v1127, %v1139
        %v1150 = vsel %vm1146, %v1129, %v1141
        %v1151 = vsel %vm1146, %v1131, %v1143
        %v1152 = vsel %vm1146, %v1133, %v1145
        %v1153 = vsel %vm1146, %v1135, %v1123
        %v1154 = vsel %vm1146, %v1137, %v1125
        %v1155 = vsel %vm1146, %v1139, %v1127
        %v1156 = vsel %vm1146, %v1141, %v1129
        %v1157 = vsel %vm1146, %v1143, %v1131
        %v1158 = vsel %vm1146, %v1145, %v1133
        %v1159 = vsel %vm408, 1, 0
        %v1160 = vsel %vm409, 1, 0
        %vm1161 = vcmp.eq.s32.totalorder %v1159, 1
        %vm1162 = vcmp.eq.s32.totalorder %v1160, 1
        %v1163 = vsel %vm1161, %v1147, 0.0
        %v1164 = vsel %vm1162, %v1153, 0.0
        %v1165 = vsel %vm1161, %v1148, 0.0
        %v1166 = vsel %vm1162, %v1154, 0.0
        %v1167 = vsel %vm1161, %v1149, 0.0
        %v1168 = vsel %vm1162, %v1155, 0.0
        %v1169 = vsel %vm1161, %v1150, 0.0
        %v1170 = vsel %vm1162, %v1156, 0.0
        %v1171 = vsel %vm1161, %v1151, 0.0
        %v1172 = vsel %vm1162, %v1157, 0.0
        %v1173 = vsel %vm1161, %v1152, 0.0
        %v1174 = vsel %vm1162, %v1158, 0.0
        %1175 = vset.pattern.permute.xlu0 7
        %1176 = vperm.xlu0 %1175, %v414
        %v1177 = vpop.permute.xlu0 %1176
        %1179 = vset.pattern.permute.xlu0 7
        %1180 = vperm.xlu0 %1179, %v415
        %v1181 = vpop.permute.xlu0 %1180
        %1183 = vset.pattern.permute.xlu0 7
        %1184 = vperm.xlu0 %1183, %v416
        %v1185 = vpop.permute.xlu0 %1184
        %1187 = vset.pattern.permute.xlu0 7
        %1188 = vperm.xlu0 %1187, %v417
        %v1189 = vpop.permute.xlu0 %1188
        %1191 = vset.pattern.permute.xlu0 7
        %1192 = vperm.xlu0 %1191, %v418
        %v1193 = vpop.permute.xlu0 %1192
        %1195 = vset.pattern.permute.xlu0 7
        %1196 = vperm.xlu0 %1195, %v419
        %v1197 = vpop.permute.xlu0 %1196
        %v1199 = vmul.f32 %v1163, %v1177
        %v1200 = vmul.f32 %v1164, %v1177
        %v1201 = vmul.f32 %v1165, %v1181
        %v1202 = vmul.f32 %v1166, %v1181
        %v1203 = vmul.f32 %v1167, %v1185
        %v1204 = vmul.f32 %v1168, %v1185
        %v1205 = vmul.f32 %v1169, %v1189
        %v1206 = vmul.f32 %v1170, %v1189
        %v1207 = vmul.f32 %v1171, %v1193
        %v1208 = vmul.f32 %v1172, %v1193
        %v1209 = vmul.f32 %v1173, %v1197
        %v1210 = vmul.f32 %v1174, %v1197
        %v1211 = vadd.f32 %v1110, %v1199
        %v1212 = vadd.f32 %v1111, %v1200
        %v1213 = vadd.f32 %v1112, %v1201
        %v1214 = vadd.f32 %v1113, %v1202
        %v1215 = vadd.f32 %v1114, %v1203
        %v1216 = vadd.f32 %v1115, %v1204
        %v1217 = vadd.f32 %v1116, %v1205
        %v1218 = vadd.f32 %v1117, %v1206
        %v1219 = vadd.f32 %v1118, %v1207
        %v1220 = vadd.f32 %v1119, %v1208
        %v1221 = vadd.f32 %v1120, %v1209
        %v1222 = vadd.f32 %v1121, %v1210
        %1223 = vrot.lane.b32.xlu0 %v371, 111
        %v1224 = vpop.permute.xlu0 %1223
        %1225 = vrot.lane.b32.xlu0 %v375, 111
        %v1226 = vpop.permute.xlu0 %1225
        %1227 = vrot.lane.b32.xlu0 %v381, 111
        %v1228 = vpop.permute.xlu0 %1227
        %1229 = vrot.lane.b32.xlu0 %v385, 111
        %v1230 = vpop.permute.xlu0 %1229
        %1231 = vrot.lane.b32.xlu0 %v391, 111
        %v1232 = vpop.permute.xlu0 %1231
        %1233 = vrot.lane.b32.xlu0 %v395, 111
        %v1234 = vpop.permute.xlu0 %1233
        %1235 = vrot.lane.b32.xlu0 %v373, 111
        %v1236 = vpop.permute.xlu0 %1235
        %1237 = vrot.lane.b32.xlu0 %v377, 111
        %v1238 = vpop.permute.xlu0 %1237
        %1239 = vrot.lane.b32.xlu0 %v383, 111
        %v1240 = vpop.permute.xlu0 %1239
        %1241 = vrot.lane.b32.xlu0 %v387, 111
        %v1242 = vpop.permute.xlu0 %1241
        %1243 = vrot.lane.b32.xlu0 %v393, 111
        %v1244 = vpop.permute.xlu0 %1243
        %1245 = vrot.lane.b32.xlu0 %v397, 111
        %v1246 = vpop.permute.xlu0 %1245
        %vm1247 = vcmp.lt.s32.totalorder %v400, 111
        %v1248 = vsel %vm1247, %v1224, %v1236
        %v1249 = vsel %vm1247, %v1226, %v1238
        %v1250 = vsel %vm1247, %v1228, %v1240
        %v1251 = vsel %vm1247, %v1230, %v1242
        %v1252 = vsel %vm1247, %v1232, %v1244
        %v1253 = vsel %vm1247, %v1234, %v1246
        %v1254 = vsel %vm1247, %v1236, %v1224
        %v1255 = vsel %vm1247, %v1238, %v1226
        %v1256 = vsel %vm1247, %v1240, %v1228
        %v1257 = vsel %vm1247, %v1242, %v1230
        %v1258 = vsel %vm1247, %v1244, %v1232
        %v1259 = vsel %vm1247, %v1246, %v1234
        %vm1260 = vmand %vm408, %vm412
        %vm1261 = vmand %vm409, %vm413
        %v1262 = vsel %vm1260, 1, 0
        %v1263 = vsel %vm1261, 1, 0
        %vm1264 = vcmp.eq.s32.totalorder %v1262, 1
        %vm1265 = vcmp.eq.s32.totalorder %v1263, 1
        %v1266 = vsel %vm1264, %v1248, 0.0
        %v1267 = vsel %vm1265, %v1254, 0.0
        %v1268 = vsel %vm1264, %v1249, 0.0
        %v1269 = vsel %vm1265, %v1255, 0.0
        %v1270 = vsel %vm1264, %v1250, 0.0
        %v1271 = vsel %vm1265, %v1256, 0.0
        %v1272 = vsel %vm1264, %v1251, 0.0
        %v1273 = vsel %vm1265, %v1257, 0.0
        %v1274 = vsel %vm1264, %v1252, 0.0
        %v1275 = vsel %vm1265, %v1258, 0.0
        %v1276 = vsel %vm1264, %v1253, 0.0
        %v1277 = vsel %vm1265, %v1259, 0.0
        %1278 = vset.pattern.permute.xlu0 8
        %1279 = vperm.xlu0 %1278, %v414
        %v1280 = vpop.permute.xlu0 %1279
        %1282 = vset.pattern.permute.xlu0 8
        %1283 = vperm.xlu0 %1282, %v415
        %v1284 = vpop.permute.xlu0 %1283
        %1286 = vset.pattern.permute.xlu0 8
        %1287 = vperm.xlu0 %1286, %v416
        %v1288 = vpop.permute.xlu0 %1287
        %1290 = vset.pattern.permute.xlu0 8
        %1291 = vperm.xlu0 %1290, %v417
        %v1292 = vpop.permute.xlu0 %1291
        %1294 = vset.pattern.permute.xlu0 8
        %1295 = vperm.xlu0 %1294, %v418
        %v1296 = vpop.permute.xlu0 %1295
        %1298 = vset.pattern.permute.xlu0 8
        %1299 = vperm.xlu0 %1298, %v419
        %v1300 = vpop.permute.xlu0 %1299
        %v1302 = vmul.f32 %v1266, %v1280
        %v1303 = vmul.f32 %v1267, %v1280
        %v1304 = vmul.f32 %v1268, %v1284
        %v1305 = vmul.f32 %v1269, %v1284
        %v1306 = vmul.f32 %v1270, %v1288
        %v1307 = vmul.f32 %v1271, %v1288
        %v1308 = vmul.f32 %v1272, %v1292
        %v1309 = vmul.f32 %v1273, %v1292
        %v1310 = vmul.f32 %v1274, %v1296
        %v1311 = vmul.f32 %v1275, %v1296
        %v1312 = vmul.f32 %v1276, %v1300
        %v1313 = vmul.f32 %v1277, %v1300
        %v1314 = vadd.f32 %v1211, %v1302
        %v1315 = vadd.f32 %v1212, %v1303
        %v1316 = vadd.f32 %v1213, %v1304
        %v1317 = vadd.f32 %v1214, %v1305
        %v1318 = vadd.f32 %v1215, %v1306
        %v1319 = vadd.f32 %v1216, %v1307
        %v1320 = vadd.f32 %v1217, %v1308
        %v1321 = vadd.f32 %v1218, %v1309
        %v1322 = vadd.f32 %v1219, %v1310
        %v1323 = vadd.f32 %v1220, %v1311
        %v1324 = vadd.f32 %v1221, %v1312
        %v1325 = vadd.f32 %v1222, %v1313
        %v1326 = vld [vmem:[%s4] sm:$0xff]
        %v1327 = vld [vmem:[%s4 + $0x8] sm:$0xff]
        %v1328 = vmul.f32 %v1314, %v1314
        %v1329 = vmul.f32 %v1315, %v1315
        %v1330 = vmul.f32 %v1316, %v1316
        %v1331 = vmul.f32 %v1317, %v1317
        %v1332 = vadd.f32 %v1328, %v1329
        %1333 = vadd.xlane.f32.xlu0 %v1332
        %v1334 = vpop.xlane.xlu0 %1333
        %v1335 = vadd.f32 %v1330, %v1331
        %1336 = vadd.xlane.f32.xlu0 %v1335
        %v1337 = vpop.xlane.xlu0 %1336
        %v1338 = vmax.f32 %v1334, 1e-24
        %v1339 = vmax.f32 %v1337, 1e-24
        %v1340 = vrsqrt.pop %v1338
        %v1341 = vrsqrt.pop %v1339
        %v1342 = vmul.f32 %v1326, %v1340
        %v1343 = vmul.f32 %v1327, %v1341
        %1345 = vset.pattern.permute.xlu0 0
        %1346 = vperm.xlu0 %1345, %v1342
        %v1347 = vpop.permute.xlu0 %1346
        %1350 = vset.pattern.permute.xlu0 0
        %1351 = vperm.xlu0 %1350, %v1343
        %v1352 = vpop.permute.xlu0 %1351
        %v1354 = vmul.f32 %v1314, %v1347
        %v1355 = vmul.f32 %v1315, %v1347
        %v1356 = vmul.f32 %v1316, %v1352
        %v1357 = vmul.f32 %v1317, %v1352
        %v1358 = vpack.c.bf16 %v1356, %v1354
        %v1359 = vpack.c.bf16 %v1357, %v1355
        %v1360 = vmul.f32 %v1318, %v1318
        %v1361 = vmul.f32 %v1319, %v1319
        %v1362 = vmul.f32 %v1320, %v1320
        %v1363 = vmul.f32 %v1321, %v1321
        %v1364 = vadd.f32 %v1360, %v1361
        %1365 = vadd.xlane.f32.xlu0 %v1364
        %v1366 = vpop.xlane.xlu0 %1365
        %v1367 = vadd.f32 %v1362, %v1363
        %1368 = vadd.xlane.f32.xlu0 %v1367
        %v1369 = vpop.xlane.xlu0 %1368
        %v1370 = vmax.f32 %v1366, 1e-24
        %v1371 = vmax.f32 %v1369, 1e-24
        %v1372 = vrsqrt.pop %v1370
        %v1373 = vrsqrt.pop %v1371
        %v1374 = vmul.f32 %v1318, %v1372
        %v1375 = vmul.f32 %v1319, %v1372
        %v1376 = vmul.f32 %v1320, %v1373
        %v1377 = vmul.f32 %v1321, %v1373
        %v1378 = vpack.c.bf16 %v1376, %v1374
        %v1379 = vpack.c.bf16 %v1377, %v1375
        %1380 = vmatprep.subr.bf16.mxu0 0
        %1381 = vmatpush1.bf16.xpose.msra.mxu0 0
        %1382 = vmatprep.subr.bf16.mxu0 0
        %1383 = vmatpush1.bf16.xpose.msra.mxu0 0
        %1384 = vmatprep.subr.bf16.mxu0 0
        %1385 = vmatpush1.bf16.xpose.msra.mxu0 0
        %1386 = vmatprep.subr.bf16.mxu0 0
        %1387 = vmatpush1.bf16.xpose.msra.mxu0 0
        %1388 = vmatprep.subr.bf16.mxu0 0
        %1389 = vmatpush1.bf16.xpose.msra.mxu0 0
        %1390 = vmatprep.subr.bf16.mxu0 0
        %1391 = vmatpush1.bf16.xpose.msra.mxu0 0
        %1392 = vmatprep.subr.bf16.mxu0 0
        %1393 = vmatpush1.bf16.xpose.msra.mxu0 0
        %1394 = vmatprep.subr.bf16.mxu0 %v1379
        %1395 = vmatpush1.bf16.xpose.msra.mxu0 %v1378
        %1396 = vmatprep.subr.bf16.mxu0 0
        %1397 = vmatpush2.bf16.xpose.msra.mxu0 0
        %1398 = vmatprep.subr.bf16.mxu0 0
        %1399 = vmatpush2.bf16.xpose.msra.mxu0 0
        %1400 = vmatprep.subr.bf16.mxu0 0
        %1401 = vmatpush2.bf16.xpose.msra.mxu0 0
        %1402 = vmatprep.subr.bf16.mxu0 0
        %1403 = vmatpush2.bf16.xpose.msra.mxu0 0
        %1404 = vmatprep.subr.bf16.mxu0 0
        %1405 = vmatpush2.bf16.xpose.msra.mxu0 0
        %1406 = vmatprep.subr.bf16.mxu0 0
        %1407 = vmatpush2.bf16.xpose.msra.mxu0 0
        %1408 = vmatprep.subr.bf16.mxu0 0
        %1409 = vmatpush2.bf16.xpose.msra.mxu0 0
        %1410 = vmatprep.subr.bf16.mxu0 0
        %1411 = vmatpush2.bf16.xpose.msra.mxu0 0
        %1412 = vmatprep.mubr.bf16.mxu0 %v1359
        %1413 = vmatmul.mubr.bf16.gmra.mxu0 %v1358
        %v1414 = vpop.f32.mrf.mxu0
        %v1415 = vadd.f32 0.0, %v1414
        %v1416 = vpop.f32.mrf.mxu0
        %v1417 = vpop.f32.mrf.mxu0
        %v1418 = vadd.f32 0.0, %v1417
        %v1419 = vpop.f32.mrf.mxu0
        %1420 = vdwg.mxu0
        %v1421 = vlaneseq
        %v1422 = vshrl.u32 %v1421, 7
        %v1423 = vadd.s32 %v1422, 8
        %v1424 = vshra.s32 %v1422, 2
        %v1425 = vshra.s32 %v1423, 2
        %v1426 = vshra.s32 %v400, 2
        %vm1427 = vcmp.eq.s32.totalorder %v1424, %v1426
        %vm1428 = vcmp.eq.s32.totalorder %v1425, %v1426
        %v1429 = vand.u32 2147483647, %v1326
        %v1430 = vand.u32 2147483647, %v1327
        %1432 = vset.pattern.permute.xlu0 0
        %1433 = vperm.xlu0 %1432, %v1429
        %v1434 = vpop.permute.xlu0 %1433
        %1437 = vset.pattern.permute.xlu0 0
        %1438 = vperm.xlu0 %1437, %v1430
        %v1439 = vpop.permute.xlu0 %1438
        %v1441 = vsub.f32 %v1415, %v1434
        %v1442 = vsub.f32 %v1418, %v1439
        %v1443 = vmul.f32 %v1441, 1.442695
        %v1444 = vpow.pop %v1443
        %v1445 = vmul.f32 %v1442, 1.442695
        %v1446 = vpow.pop %v1445
        %v1447 = vsel %vm1427, %v1444, 0.0
        %v1448 = vsel %vm1428, %v1446, 0.0
        %vm1449 = vcmask 130048
        %v1450 = vsel %vm1449, %v1447, 0.0
        %1451 = vadd.xlane.f32.xlu0 %v1450
        %v1452 = vpop.xlane.xlu0 %1451
        %v1453 = vsel %vm1449, %v1448, 0.0
        %1454 = vadd.xlane.f32.xlu0 %v1453
        %v1455 = vpop.xlane.xlu0 %1454
        %v1456 = vrcp.pop %v1452
        %v1457 = vrcp.pop %v1455
        %v1458 = vmul.f32 %v1447, %v1456
        %v1459 = vmul.f32 %v1448, %v1457
        %v1460 = vpack.c.bf16 %v1459, %v1458
        %v1461 = vpack.c.bf16 %v1324, %v1322
        %v1462 = vpack.c.bf16 %v1325, %v1323
        %v1464 = vsel %vm1449, %v1460, 0
        %1466 = vmatprep.subr.bf16.mxu0 0
        %1467 = vmatpush1.bf16.msra.mxu0 0
        %1468 = vmatprep.subr.bf16.mxu0 0
        %1469 = vmatpush1.bf16.msra.mxu0 0
        %1470 = vmatprep.subr.bf16.mxu0 0
        %1471 = vmatpush1.bf16.msra.mxu0 0
        %1472 = vmatprep.subr.bf16.mxu0 0
        %1473 = vmatpush1.bf16.msra.mxu0 0
        %1474 = vmatprep.subr.bf16.mxu0 0
        %1475 = vmatpush1.bf16.msra.mxu0 0
        %1476 = vmatprep.subr.bf16.mxu0 0
        %1477 = vmatpush1.bf16.msra.mxu0 0
        %1478 = vmatprep.subr.bf16.mxu0 0
        %1479 = vmatpush1.bf16.msra.mxu0 0
        %1480 = vmatprep.subr.bf16.mxu0 %v1462
        %1481 = vmatpush1.bf16.msra.mxu0 %v1461
        %1482 = vmatprep.subr.bf16.mxu0 0
        %1483 = vmatpush2.bf16.msra.mxu0 0
        %1484 = vmatprep.subr.bf16.mxu0 0
        %1485 = vmatpush2.bf16.msra.mxu0 0
        %1486 = vmatprep.subr.bf16.mxu0 0
        %1487 = vmatpush2.bf16.msra.mxu0 0
        %1488 = vmatprep.subr.bf16.mxu0 0
        %1489 = vmatpush2.bf16.msra.mxu0 0
        %1490 = vmatprep.subr.bf16.mxu0 0
        %1491 = vmatpush2.bf16.msra.mxu0 0
        %1492 = vmatprep.subr.bf16.mxu0 0
        %1493 = vmatpush2.bf16.msra.mxu0 0
        %1494 = vmatprep.subr.bf16.mxu0 0
        %1495 = vmatpush2.bf16.msra.mxu0 0
        %1496 = vmatprep.subr.bf16.mxu0 0
        %1497 = vmatpush2.bf16.msra.mxu0 0
        %1498 = vmatprep.mubr.bf16.mxu0 0
        %1499 = vmatmul.mubr.bf16.gmra.mxu0 %v1464
        %v1500 = vpop.f32.mrf.mxu0
        %v1501 = vadd.f32 0.0, %v1500
        %v1502 = vpop.f32.mrf.mxu0
        %v1503 = vadd.f32 0.0, %v1502
        %v1504 = vpop.f32.mrf.mxu0
        %v1505 = vadd.f32 0.0, %v1504
        %v1506 = vpop.f32.mrf.mxu0
        %v1507 = vadd.f32 0.0, %v1506
        %1508 = vdwg.mxu0
        %v1509 = vld [vmem:[%s5] sm:$0xf]
        %v1510 = vld [vmem:[%s5 + $0x4] sm:$0xf]
        %v1511 = vpack.c.bf16 %v1505, %v1501
        %v1512 = vpack.c.bf16 %v1507, %v1503
        %v1513 = vld [vmem:[%s6] sm:$0xff]
        %v1514 = vld [vmem:[%s6 + $0x8] sm:$0xff]
        %1516 = vset.pattern.permute.xlu0 0
        %1517 = vperm.xlu0 %1516, %v1513
        %v1518 = vpop.permute.xlu0 %1517
        %1521 = vset.pattern.permute.xlu0 0
        %1522 = vperm.xlu0 %1521, %v1514
        %v1523 = vpop.permute.xlu0 %1522
        %v1527 = vunpack.c.l.b16 %v1509
        %v1528 = vunpack.c.l.b16 %v1510
        %v1529 = vpack.c.b16 %v1528, %v1527
        %v1531 = vsel %vm1449, %v1529, 0
        %1533 = vmatprep.subr.bf16.mxu0 0
        %1534 = vmatpush1.bf16.msra.mxu0 0
        %1535 = vmatprep.subr.bf16.mxu0 0
        %1536 = vmatpush1.bf16.msra.mxu0 0
        %1537 = vmatprep.subr.bf16.mxu0 0
        %1538 = vmatpush1.bf16.msra.mxu0 0
        %1539 = vmatprep.subr.bf16.mxu0 0
        %1540 = vmatpush1.bf16.msra.mxu0 0
        %1541 = vmatprep.subr.bf16.mxu0 0
        %1542 = vmatpush1.bf16.msra.mxu0 0
        %1543 = vmatprep.subr.bf16.mxu0 0
        %1544 = vmatpush1.bf16.msra.mxu0 0
        %1545 = vmatprep.subr.bf16.mxu0 0
        %1546 = vmatpush1.bf16.msra.mxu0 0
        %1547 = vmatprep.subr.bf16.mxu0 %v1512
        %1548 = vmatpush1.bf16.msra.mxu0 %v1511
        %1549 = vmatprep.subr.bf16.mxu0 0
        %1550 = vmatpush2.bf16.msra.mxu0 0
        %1551 = vmatprep.subr.bf16.mxu0 0
        %1552 = vmatpush2.bf16.msra.mxu0 0
        %1553 = vmatprep.subr.bf16.mxu0 0
        %1554 = vmatpush2.bf16.msra.mxu0 0
        %1555 = vmatprep.subr.bf16.mxu0 0
        %1556 = vmatpush2.bf16.msra.mxu0 0
        %1557 = vmatprep.subr.bf16.mxu0 0
        %1558 = vmatpush2.bf16.msra.mxu0 0
        %1559 = vmatprep.subr.bf16.mxu0 0
        %1560 = vmatpush2.bf16.msra.mxu0 0
        %1561 = vmatprep.subr.bf16.mxu0 0
        %1562 = vmatpush2.bf16.msra.mxu0 0
        %1563 = vmatprep.subr.bf16.mxu0 0
        %1564 = vmatpush2.bf16.msra.mxu0 0
        %1565 = vmatprep.mubr.bf16.mxu0 0
        %1566 = vmatmul.mubr.bf16.gmra.mxu0 %v1531
        %v1567 = vpop.f32.mrf.mxu0
        %v1568 = vadd.f32 %v1518, %v1567
        %v1569 = vpop.f32.mrf.mxu0
        %v1570 = vadd.f32 %v1518, %v1569
        %v1571 = vpop.f32.mrf.mxu0
        %v1572 = vadd.f32 %v1523, %v1571
        %v1573 = vpop.f32.mrf.mxu0
        %v1574 = vadd.f32 %v1523, %v1573
        %1575 = vdwg.mxu0
        %1576 = vst [vmem:[%s271] sm:$0xff] %v1568
        %1577 = vst [vmem:[%s271 + $0x8] sm:$0xff] %v1570
        %1578 = vst [vmem:[%s271 + $0x10] sm:$0xff] %v1572
        %1579 = vst [vmem:[%s271 + $0x18] sm:$0xff] %v1574
        %s1580 = sand.u32 %s181, 1
        %s1581 = scalar_lea.sflag [#allocation3], %s1580
        %s1582 = sand.u32 %s181, 1
        %s1583 = smul.addr %s1582, 32
        %s1584 = scalar_lea.vmem [#allocation2], %s1583
        // Predicated region
        $region49: #{tpu_custom_call.1} parent=47 // pred_check
          %p1585 = pneg %p191
        $region50: #{tpu_custom_call.1} parent=47 // pred_check_branch
          %1587 = sbr.rel (%p1585) target = $region52
        $region51: #{tpu_custom_call.1} parent=47 // pred_region
          %s1589 = ssub.s32 512, 512
          %1590 = vsyncadd %s1581, %s1589
          %s1591 = smul.addr %s21, 4
          %s1592 = smul.addr %s1591, 128
          %s1593 = scalar_lea.hbm %s7, %s1592
          %s1594 = sshll.u32 %s1584, 4
          %s1595 = int_to_ptr.vmem [resolvable:$true] %s1594
          %1600 = dma.vmem_to_hbm [thread:$0]  %s1595, 512, %s1593, %s1581, 256, 256, 16
        $region52: #{tpu_custom_call.1} parent=47 // pred_fallthru
          _
      $region48: #{tpu_custom_call.1} parent=5 // pred_fallthru
        _
      %p1601 = scmp.le.s32.totalorder 2, %s16
      // Predicated region
      $region53: #{tpu_custom_call.1} parent=5 // pred_check
        %p1602 = pneg %p1601
      $region54: #{tpu_custom_call.1} parent=5 // pred_check_branch
        %1604 = sbr.rel (%p1602) target = $region56
      $region55: #{tpu_custom_call.1} parent=5 // pred_region
        %s1605 = ssub.s32 %s16, 2
        // Predicated region
        $region57: #{tpu_custom_call.1} parent=55 // pred_check
          %p1606 = pneg %p197
        $region58: #{tpu_custom_call.1} parent=55 // pred_check_branch
          %1608 = sbr.rel (%p1606) target = $region60
        $region59: #{tpu_custom_call.1} parent=55 // pred_region
          %s1609 = sand.u32 %s182, 1
          %s1610 = scalar_lea.sflag [#allocation3], %s1609
          %s1611 = sand.u32 %s182, 1
          %s1612 = smul.addr %s1611, 32
          %s1613 = scalar_lea.vmem [#allocation2], %s1612
          %1614 = dma.done %s1610, 512
        $region60: #{tpu_custom_call.1} parent=55 // pred_fallthru
          _
      $region56: #{tpu_custom_call.1} parent=5 // pred_fallthru
        _
    $region6: #{tpu_custom_call.1} parent=1 // loop_footer
      %s20 = sadd.s32 1, %s16
    $region7: #{tpu_custom_call.1} parent=1 // loop_footer_branch
      %15 = sbr.rel target = $region3
    $region8: #{tpu_custom_call.1} parent=1 // loop_exit
      _
    %1615 = vsyncpa [#allocation3], 1
    %s1616 = scalar_lea.sflag [#allocation3], 1
    %1617 = vsyncpa %s1616, 1

</llo_original>
